<compile_context>
chip_gen: v7x
topology: tpu7x:2x2x1
jax: 0.10.0
libtpu: 0.0.40
codegen_flags: <defaults>
</compile_context>

<pallas_src>
import functools
import math

import numpy as np
import jax
import jax.numpy as jnp
from jax.experimental import pallas as pl
from jax.experimental.pallas import tpu as pltpu

# Small, module-consistent configuration (dim_model / heads / dk / dv / inner scaled down).
DIM_MODEL = 32
QTY_HEAD = 4
DIM_K = 16
DIM_V = 16
DIM_INNER = 64
BATCH = 2
SEQ = 8
QTY_ENCODER_LAYER = 2
LN_EPS = 1e-5


def _layer_norm(y, gamma, beta):
    mu = jnp.mean(y, axis=-1, keepdims=True)
    var = jnp.mean((y - mu) ** 2, axis=-1, keepdims=True)
    return (y - mu) * jax.lax.rsqrt(var + LN_EPS) * gamma + beta


# ---------------------------------------------------------------------------
# Fused kernel: one grid step == one EncoderLayer (MHA + residual + LN + FFN
# + residual + LN).  The activation is carried layer-to-layer in VMEM scratch.
# ---------------------------------------------------------------------------
def _encoder_kernel(x_ref, wqkv_ref, wo_ref, bo_ref, g1_ref, be1_ref,
                    w1_ref, bf1_ref, w2_ref, bf2_ref, g2_ref, be2_ref,
                    o_ref, act_ref, *, B, L, H, dk, dv, inv_temper):
    layer = pl.program_id(0)
    D = x_ref.shape[-1]
    N = B * L
    HDK = H * dk
    HDV = H * dv

    # Layer 0: pull the input into the f32 VMEM carry.
    @pl.when(layer == 0)
    def _():
        act_ref[...] = x_ref[...].reshape(N, D).astype(jnp.float32)

    x = act_ref[...]                                   # (N, D) f32, VMEM-resident

    # ---------------- Multi-head self-attention ----------------
    # Single fused, lane-dense QKV projection: (N, D) @ (D, 3*H*dk).
    qkv = jnp.dot(x, wqkv_ref[...], preferred_element_type=jnp.float32)
    q = qkv[:, :HDK] * inv_temper                      # fold 1/temper into Q
    k = qkv[:, HDK:2 * HDK]
    v = qkv[:, 2 * HDK:]
    q3 = q.reshape(B, L, HDK)
    k3 = k.reshape(B, L, HDK)
    v3 = v.reshape(B, L, HDV)

    # Per-head batched scores (H is tiny & static -> unrolls into H einsums),
    # stacked head-major to (H*B, L, L) exactly like the torch view(-1, L, dk).
    scores = jnp.concatenate(
        [jnp.einsum('blk,bmk->blm',
                    q3[:, :, h * dk:(h + 1) * dk],
                    k3[:, :, h * dk:(h + 1) * dk],
                    preferred_element_type=jnp.float32)
         for h in range(H)], axis=0)

    # NOTE: the torch module calls nn.Softmax() with no `dim` on a 3-D tensor;
    # legacy PyTorch resolves that to dim=0, i.e. normalization over the
    # head*batch axis.  Reproduced faithfully with one stacked max/exp/sum.
    m = jnp.max(scores, axis=0, keepdims=True)
    e = jnp.exp(scores - m)
    z = jnp.sum(e, axis=0, keepdims=True)
    attn = e * pl.reciprocal(z, approx=True)           # attn_dropout: identity (eval)

    # attention @ V per head, concatenated head-major -> (N, H*dv)
    # (== torch.cat(torch.split(outputs, B, 0), dim=-1)).
    cat = jnp.concatenate(
        [jnp.einsum('blm,bmv->blv',
                    attn[h * B:(h + 1) * B],
                    v3[:, :, h * dv:(h + 1) * dv],
                    preferred_element_type=jnp.float32)
         for h in range(H)], axis=-1).reshape(N, HDV)

    # Single fused output projection + bias + residual + LayerNorm (dropout = id).
    proj = jnp.dot(cat, wo_ref[...], preferred_element_type=jnp.float32) + bo_ref[...]
    y = _layer_norm(proj + x, g1_ref[...], be1_ref[...])

    # ---------------- Position-wise feed-forward ----------------
    h1 = jnp.maximum(
        jnp.dot(y, w1_ref[...], preferred_element_type=jnp.float32) + bf1_ref[...], 0.0)
    z2 = jnp.dot(h1, w2_ref[...], preferred_element_type=jnp.float32) + bf2_ref[...] + y
    out = _layer_norm(z2, g2_ref[...], be2_ref[...])

    act_ref[...] = out                                 # carry to next layer (stays in VMEM)

    @pl.when(layer == pl.num_programs(0) - 1)
    def _():
        o_ref[...] = out.reshape(B, L, D).astype(o_ref.dtype)   # single output store


# ---------------------------------------------------------------------------
# Wrapper: one pallas_call, grid = (num_layers,), weights stacked per layer.
# ---------------------------------------------------------------------------
def transformer_encoder(x, stacked):
    # TransformerEncoder.forward with embedding=False: the input *is* the word
    # embedding; position_encoder / word_embedding_layer are never used.
    B, L, D = x.shape
    NL = stacked["wqkv"].shape[0]
    H, dk, dv, dih = QTY_HEAD, DIM_K, DIM_V, DIM_INNER

    kernel = functools.partial(_encoder_kernel, B=B, L=L, H=H, dk=dk, dv=dv,
                               inv_temper=1.0 / math.sqrt(D))

    def wspec(shape):
        # Per-layer slice of a layer-stacked parameter; leading layer dim squeezed.
        return pl.BlockSpec((None,) + shape, lambda l: (l,) + (0,) * len(shape))

    def full(shape):
        return pl.BlockSpec(shape, lambda l: (0,) * len(shape))

    grid_spec = pltpu.PrefetchScalarGridSpec(
        num_scalar_prefetch=0,
        grid=(NL,),
        in_specs=[
            full((B, L, D)),                 # x (only read at layer 0)
            wspec((D, 3 * H * dk)),          # fused [Wq | Wk | Wv]
            wspec((H * dv, D)),              # output projection
            wspec((1, D)),                   # projection bias
            wspec((1, D)), wspec((1, D)),    # LayerNorm 1 gamma / beta
            wspec((D, dih)), wspec((1, dih)),  # FFN conv1 (as matmul) + bias
            wspec((dih, D)), wspec((1, D)),    # FFN conv2 (as matmul) + bias
            wspec((1, D)), wspec((1, D)),    # LayerNorm 2 gamma / beta
        ],
        out_specs=full((B, L, D)),
        scratch_shapes=[pltpu.VMEM((B * L, D), jnp.float32)],  # layer-to-layer carry
    )

    return pl.pallas_call(
        kernel,
        out_shape=jax.ShapeDtypeStruct((B, L, D), x.dtype),
        grid_spec=grid_spec,
        compiler_params=pltpu.CompilerParams(
            dimension_semantics=("arbitrary",)),     # layers are sequential
    )(x, stacked["wqkv"], stacked["wo"], stacked["bo"],
      stacked["ln1_g"], stacked["ln1_b"],
      stacked["w1"], stacked["b1"], stacked["w2"], stacked["b2"],
      stacked["ln2_g"], stacked["ln2_b"])


# ---------------------------------------------------------------------------
# Deterministic synthetic parameters (shapes follow the module's __init__)
# ---------------------------------------------------------------------------
def init_layer_params(key):
    ks = jax.random.split(key, 9)
    H, D, dk, dv, dih = QTY_HEAD, DIM_MODEL, DIM_K, DIM_V, DIM_INNER

    def xavier(k, shape, fan_in, fan_out):
        std = math.sqrt(2.0 / (fan_in + fan_out))
        return std * jax.random.normal(k, shape, dtype=jnp.float32)

    return {
        # MultiHeadAttention
        "wq": xavier(ks[0], (H, D, dk), D * dk, H * dk),
        "wk": xavier(ks[1], (H, D, dk), D * dk, H * dk),
        "wv": xavier(ks[2], (H, D, dv), D * dv, H * dv),
        # projection Linear(H*dv -> D): stored pre-transposed, split per head
        "wo": (1.0 / math.sqrt(H * dv)) * jax.random.normal(ks[3], (H, dv, D), jnp.float32),
        "bo": (1.0 / math.sqrt(H * dv)) * jax.random.normal(ks[4], (1, D), jnp.float32),
        "ln1_g": jnp.ones((1, D), jnp.float32),
        "ln1_b": jnp.zeros((1, D), jnp.float32),
        # PositionwiseFeedForward: Conv1d(D, dih, 1) / Conv1d(dih, D, 1) as matrices
        "w1": (1.0 / math.sqrt(D)) * jax.random.normal(ks[5], (D, dih), jnp.float32),
        "b1": (1.0 / math.sqrt(D)) * jax.random.normal(ks[6], (1, dih), jnp.float32),
        "w2": (1.0 / math.sqrt(dih)) * jax.random.normal(ks[7], (dih, D), jnp.float32),
        "b2": (1.0 / math.sqrt(dih)) * jax.random.normal(ks[8], (1, D), jnp.float32),
        "ln2_g": jnp.ones((1, D), jnp.float32),
        "ln2_b": jnp.zeros((1, D), jnp.float32),
    }


def stack_params(layer_params):
    """Fuse Wq/Wk/Wv per layer and stack every parameter along a leading layer dim."""
    H, D, dk, dv = QTY_HEAD, DIM_MODEL, DIM_K, DIM_V

    def per_layer(p):
        wq = p["wq"].transpose(1, 0, 2).reshape(D, H * dk)   # [d, h*dk+k] = wq[h,d,k]
        wk = p["wk"].transpose(1, 0, 2).reshape(D, H * dk)
        wv = p["wv"].transpose(1, 0, 2).reshape(D, H * dv)
        return {
            "wqkv": jnp.concatenate([wq, wk, wv], axis=1),   # (D, 3*H*dk)
            "wo": p["wo"].reshape(H * dv, D),
            "bo": p["bo"], "ln1_g": p["ln1_g"], "ln1_b": p["ln1_b"],
            "w1": p["w1"], "b1": p["b1"], "w2": p["w2"], "b2": p["b2"],
            "ln2_g": p["ln2_g"], "ln2_b": p["ln2_b"],
        }

    per = [per_layer(p) for p in layer_params]
    return {k: jnp.stack([q[k] for q in per], axis=0) for k in per[0]}


# ---------------------------------------------------------------------------
# Pure-JAX reference (same math) for a correctness check
# ---------------------------------------------------------------------------
def _ln_ref(y, g, b):
    mu = jnp.mean(y, axis=-1, keepdims=True)
    var = jnp.mean((y - mu) ** 2, axis=-1, keepdims=True)
    return (y - mu) / jnp.sqrt(var + LN_EPS) * g + b


def _ref_layer(x, p):
    B, L, D = x.shape
    H = p["wq"].shape[0]
    temper = math.sqrt(D)
    q = jnp.einsum("bld,hdk->hblk", x, p["wq"])
    k = jnp.einsum("bld,hdk->hblk", x, p["wk"])
    v = jnp.einsum("bld,hdv->hblv", x, p["wv"])
    s = jnp.einsum("hbqk,hbmk->hbqm", q, k) / temper
    attn = jax.nn.softmax(s.reshape(H * B, L, L), axis=0).reshape(H, B, L, L)
    av = jnp.einsum("hbqm,hbmv->hbqv", attn, v)
    proj = jnp.einsum("hbqv,hvd->bqd", av, p["wo"]) + p["bo"][0]
    y = _ln_ref(proj + x, p["ln1_g"][0], p["ln1_b"][0])
    h = jax.nn.relu(jnp.einsum("bld,df->blf", y, p["w1"]) + p["b1"][0])
    z = jnp.einsum("blf,fd->bld", h, p["w2"]) + p["b2"][0] + y
    return _ln_ref(z, p["ln2_g"][0], p["ln2_b"][0])


def reference_forward(x, layer_params):
    out = x
    for p in layer_params:
        out = _ref_layer(out, p)
    return out


if __name__ == "__main__":
    key = jax.random.PRNGKey(0)
    k_x, k_p = jax.random.split(key)
    x = jax.random.normal(k_x, (BATCH, SEQ, DIM_MODEL), dtype=jnp.float32)
    layer_params = [init_layer_params(jax.random.fold_in(k_p, i))
                    for i in range(QTY_ENCODER_LAYER)]
    stacked = stack_params(layer_params)

    out = transformer_encoder(x, stacked)
    out = jax.block_until_ready(out)

    ref = reference_forward(x, layer_params)
    np.testing.assert_allclose(np.asarray(out), np.asarray(ref),
                               rtol=1e-2, atol=1e-2)
    assert out.shape == (BATCH, SEQ, DIM_MODEL)
    print("KERNEL_OK")
</pallas_src>

<mosaic_0001>
module attributes {stable_mosaic.version = 11 : i64} {
  func.func @_encoder_kernel(%arg0: i32, %arg1: memref<2x8x32xf32, #tpu.memory_space<vmem>>, %arg2: memref<1x32x192xf32, #tpu.memory_space<vmem>>, %arg3: memref<1x64x32xf32, #tpu.memory_space<vmem>>, %arg4: memref<1x1x32xf32, #tpu.memory_space<vmem>>, %arg5: memref<1x1x32xf32, #tpu.memory_space<vmem>>, %arg6: memref<1x1x32xf32, #tpu.memory_space<vmem>>, %arg7: memref<1x32x64xf32, #tpu.memory_space<vmem>>, %arg8: memref<1x1x64xf32, #tpu.memory_space<vmem>>, %arg9: memref<1x64x32xf32, #tpu.memory_space<vmem>>, %arg10: memref<1x1x32xf32, #tpu.memory_space<vmem>>, %arg11: memref<1x1x32xf32, #tpu.memory_space<vmem>>, %arg12: memref<1x1x32xf32, #tpu.memory_space<vmem>>, %arg13: memref<2x8x32xf32, #tpu.memory_space<vmem>>, %arg14: memref<16x32xf32, #tpu.memory_space<vmem>>) attributes {dimension_semantics = [#tpu.dimension_semantics<arbitrary>], iteration_bounds = array<i64: 2>, scalar_prefetch = 0 : i64, scratch_operands = 1 : i64, tpu.core_type = #tpu.core_type<tc>, window_params = [{pipeline_mode = #tpu.pipeline_mode<synchronous>, transform_indices = @transform_0, window_bounds = array<i64: 2, 8, 32>}, {transform_indices = @transform_1, window_bounds = array<i64: 1, 32, 192>}, {transform_indices = @transform_2, window_bounds = array<i64: 1, 64, 32>}, {transform_indices = @transform_3, window_bounds = array<i64: 1, 1, 32>}, {transform_indices = @transform_4, window_bounds = array<i64: 1, 1, 32>}, {transform_indices = @transform_5, window_bounds = array<i64: 1, 1, 32>}, {transform_indices = @transform_6, window_bounds = array<i64: 1, 32, 64>}, {transform_indices = @transform_7, window_bounds = array<i64: 1, 1, 64>}, {transform_indices = @transform_8, window_bounds = array<i64: 1, 64, 32>}, {transform_indices = @transform_9, window_bounds = array<i64: 1, 1, 32>}, {transform_indices = @transform_10, window_bounds = array<i64: 1, 1, 32>}, {transform_indices = @transform_11, window_bounds = array<i64: 1, 1, 32>}, {pipeline_mode = #tpu.pipeline_mode<synchronous>, transform_indices = @transform_12, window_bounds = array<i64: 2, 8, 32>}]} {
    %c0_i32 = arith.constant 0 : i32
    %0 = arith.cmpi eq, %arg0, %c0_i32 : i32
    %1 = arith.extui %0 : i1 to i32
    %c0_i32_0 = arith.constant 0 : i32
    %2 = arith.cmpi ne, %1, %c0_i32_0 : i32
    scf.if %2 {
      %c0_63 = arith.constant 0 : index
      %c0_64 = arith.constant 0 : index
      %c0_65 = arith.constant 0 : index
      %133 = vector.load %arg1[%c0_63, %c0_64, %c0_65] : memref<2x8x32xf32, #tpu.memory_space<vmem>>, vector<2x8x32xf32>
      %134 = vector.shape_cast %133 : vector<2x8x32xf32> to vector<16x32xf32>
      %c0_66 = arith.constant 0 : index
      %c0_67 = arith.constant 0 : index
      %135 = vector.load %arg14[%c0_66, %c0_67] : memref<16x32xf32, #tpu.memory_space<vmem>>, vector<16x32xf32>
      tpu.vector_store %arg14[%c0_66, %c0_67], %134 {strides = array<i32>} : memref<16x32xf32, #tpu.memory_space<vmem>>, vector<16x32xf32>,
    } else {
    }
    %c0 = arith.constant 0 : index
    %c0_1 = arith.constant 0 : index
    %3 = vector.load %arg14[%c0, %c0_1] : memref<16x32xf32, #tpu.memory_space<vmem>>, vector<16x32xf32>
    %c0_2 = arith.constant 0 : index
    %c0_3 = arith.constant 0 : index
    %c0_4 = arith.constant 0 : index
    %4 = vector.load %arg2[%c0_2, %c0_3, %c0_4] : memref<1x32x192xf32, #tpu.memory_space<vmem>>, vector<1x32x192xf32>
    %5 = vector.shape_cast %4 : vector<1x32x192xf32> to vector<32x192xf32>
    %cst = arith.constant dense<0.000000e+00> : vector<16x192xf32>
    %6 = tpu.matmul %3, %5, %cst {dimension_numbers = #tpu.dot_dimension_numbers<[1], [0], [0], [1], [0, 0, 1, 1], [], []>} : vector<16x32xf32>, vector<32x192xf32>, vector<16x192xf32> -> vector<16x192xf32>
    %7 = vector.extract_strided_slice %6 {offsets = [0, 0], sizes = [16, 64], strides = [1, 1]} : vector<16x192xf32> to vector<16x64xf32>
    %cst_5 = arith.constant 0.176776692 : f32
    %8 = vector.broadcast %cst_5 : f32 to vector<16x64xf32>
    %9 = arith.mulf %7, %8 : vector<16x64xf32>
    %10 = vector.extract_strided_slice %6 {offsets = [0, 64], sizes = [16, 64], strides = [1, 1]} : vector<16x192xf32> to vector<16x64xf32>
    %11 = vector.extract_strided_slice %6 {offsets = [0, 128], sizes = [16, 64], strides = [1, 1]} : vector<16x192xf32> to vector<16x64xf32>
    %12 = vector.shape_cast %9 : vector<16x64xf32> to vector<2x8x64xf32>
    %13 = vector.shape_cast %10 : vector<16x64xf32> to vector<2x8x64xf32>
    %14 = vector.shape_cast %11 : vector<16x64xf32> to vector<2x8x64xf32>
    %15 = vector.extract_strided_slice %12 {offsets = [0, 0, 0], sizes = [2, 8, 16], strides = [1, 1, 1]} : vector<2x8x64xf32> to vector<2x8x16xf32>
    %16 = vector.extract_strided_slice %13 {offsets = [0, 0, 0], sizes = [2, 8, 16], strides = [1, 1, 1]} : vector<2x8x64xf32> to vector<2x8x16xf32>
    "tpu.trace_start"() <{level = 10 : i32, message = "blk,bmk->blm"}> : () -> ()
    %cst_6 = arith.constant dense<0.000000e+00> : vector<2x8x8xf32>
    %17 = tpu.matmul %15, %16, %cst_6 {dimension_numbers = #tpu.dot_dimension_numbers<[2], [2], [1], [1], [0, 0, 0, 1, 1, 1], [0], [0]>} : vector<2x8x16xf32>, vector<2x8x16xf32>, vector<2x8x8xf32> -> vector<2x8x8xf32>
    "tpu.trace_stop"() : () -> ()
    %18 = vector.extract_strided_slice %12 {offsets = [0, 0, 16], sizes = [2, 8, 16], strides = [1, 1, 1]} : vector<2x8x64xf32> to vector<2x8x16xf32>
    %19 = vector.extract_strided_slice %13 {offsets = [0, 0, 16], sizes = [2, 8, 16], strides = [1, 1, 1]} : vector<2x8x64xf32> to vector<2x8x16xf32>
    "tpu.trace_start"() <{level = 10 : i32, message = "blk,bmk->blm"}> : () -> ()
    %cst_7 = arith.constant dense<0.000000e+00> : vector<2x8x8xf32>
    %20 = tpu.matmul %18, %19, %cst_7 {dimension_numbers = #tpu.dot_dimension_numbers<[2], [2], [1], [1], [0, 0, 0, 1, 1, 1], [0], [0]>} : vector<2x8x16xf32>, vector<2x8x16xf32>, vector<2x8x8xf32> -> vector<2x8x8xf32>
    "tpu.trace_stop"() : () -> ()
    %21 = vector.extract_strided_slice %12 {offsets = [0, 0, 32], sizes = [2, 8, 16], strides = [1, 1, 1]} : vector<2x8x64xf32> to vector<2x8x16xf32>
    %22 = vector.extract_strided_slice %13 {offsets = [0, 0, 32], sizes = [2, 8, 16], strides = [1, 1, 1]} : vector<2x8x64xf32> to vector<2x8x16xf32>
    "tpu.trace_start"() <{level = 10 : i32, message = "blk,bmk->blm"}> : () -> ()
    %cst_8 = arith.constant dense<0.000000e+00> : vector<2x8x8xf32>
    %23 = tpu.matmul %21, %22, %cst_8 {dimension_numbers = #tpu.dot_dimension_numbers<[2], [2], [1], [1], [0, 0, 0, 1, 1, 1], [0], [0]>} : vector<2x8x16xf32>, vector<2x8x16xf32>, vector<2x8x8xf32> -> vector<2x8x8xf32>
    "tpu.trace_stop"() : () -> ()
    %24 = vector.extract_strided_slice %12 {offsets = [0, 0, 48], sizes = [2, 8, 16], strides = [1, 1, 1]} : vector<2x8x64xf32> to vector<2x8x16xf32>
    %25 = vector.extract_strided_slice %13 {offsets = [0, 0, 48], sizes = [2, 8, 16], strides = [1, 1, 1]} : vector<2x8x64xf32> to vector<2x8x16xf32>
    "tpu.trace_start"() <{level = 10 : i32, message = "blk,bmk->blm"}> : () -> ()
    %cst_9 = arith.constant dense<0.000000e+00> : vector<2x8x8xf32>
    %26 = tpu.matmul %24, %25, %cst_9 {dimension_numbers = #tpu.dot_dimension_numbers<[2], [2], [1], [1], [0, 0, 0, 1, 1, 1], [0], [0]>} : vector<2x8x16xf32>, vector<2x8x16xf32>, vector<2x8x8xf32> -> vector<2x8x8xf32>
    "tpu.trace_stop"() : () -> ()
    %27 = tpu.concatenate %17, %20, %23, %26 in 0 : vector<2x8x8xf32>, vector<2x8x8xf32>, vector<2x8x8xf32>, vector<2x8x8xf32> -> vector<8x8x8xf32>
    %cst_10 = arith.constant dense<0xFF800000> : vector<8x8xf32>
    %28 = vector.multi_reduction <maximumf>, %27, %cst_10 [0] : vector<8x8x8xf32> to vector<8x8xf32>
    %29 = vector.shape_cast %28 : vector<8x8xf32> to vector<1x8x8xf32>
    %30 = vector.broadcast %29 : vector<1x8x8xf32> to vector<8x8x8xf32>
    %31 = arith.subf %27, %30 : vector<8x8x8xf32>
    %32 = math.exp %31 : vector<8x8x8xf32>
    %cst_11 = arith.constant dense<0.000000e+00> : vector<8x8xf32>
    %33 = vector.multi_reduction <add>, %32, %cst_11 [0] : vector<8x8x8xf32> to vector<8x8xf32>
    %34 = vector.shape_cast %33 : vector<8x8xf32> to vector<1x8x8xf32>
    %35 = tpu.reciprocal %34 {approx = true} : vector<1x8x8xf32> -> vector<1x8x8xf32>
    %36 = vector.broadcast %35 : vector<1x8x8xf32> to vector<8x8x8xf32>
    %37 = arith.mulf %32, %36 : vector<8x8x8xf32>
    %38 = vector.extract_strided_slice %37 {offsets = [0, 0, 0], sizes = [2, 8, 8], strides = [1, 1, 1]} : vector<8x8x8xf32> to vector<2x8x8xf32>
    %39 = vector.extract_strided_slice %14 {offsets = [0, 0, 0], sizes = [2, 8, 16], strides = [1, 1, 1]} : vector<2x8x64xf32> to vector<2x8x16xf32>
    "tpu.trace_start"() <{level = 10 : i32, message = "blm,bmv->blv"}> : () -> ()
    %cst_12 = arith.constant dense<0.000000e+00> : vector<2x8x16xf32>
    %40 = tpu.matmul %38, %39, %cst_12 {dimension_numbers = #tpu.dot_dimension_numbers<[2], [1], [1], [2], [0, 0, 0, 1, 1, 2], [0], [0]>} : vector<2x8x8xf32>, vector<2x8x16xf32>, vector<2x8x16xf32> -> vector<2x8x16xf32>
    "tpu.trace_stop"() : () -> ()
    %41 = vector.extract_strided_slice %37 {offsets = [2, 0, 0], sizes = [2, 8, 8], strides = [1, 1, 1]} : vector<8x8x8xf32> to vector<2x8x8xf32>
    %42 = vector.extract_strided_slice %14 {offsets = [0, 0, 16], sizes = [2, 8, 16], strides = [1, 1, 1]} : vector<2x8x64xf32> to vector<2x8x16xf32>
    "tpu.trace_start"() <{level = 10 : i32, message = "blm,bmv->blv"}> : () -> ()
    %cst_13 = arith.constant dense<0.000000e+00> : vector<2x8x16xf32>
    %43 = tpu.matmul %41, %42, %cst_13 {dimension_numbers = #tpu.dot_dimension_numbers<[2], [1], [1], [2], [0, 0, 0, 1, 1, 2], [0], [0]>} : vector<2x8x8xf32>, vector<2x8x16xf32>, vector<2x8x16xf32> -> vector<2x8x16xf32>
    "tpu.trace_stop"() : () -> ()
    %44 = vector.extract_strided_slice %37 {offsets = [4, 0, 0], sizes = [2, 8, 8], strides = [1, 1, 1]} : vector<8x8x8xf32> to vector<2x8x8xf32>
    %45 = vector.extract_strided_slice %14 {offsets = [0, 0, 32], sizes = [2, 8, 16], strides = [1, 1, 1]} : vector<2x8x64xf32> to vector<2x8x16xf32>
    "tpu.trace_start"() <{level = 10 : i32, message = "blm,bmv->blv"}> : () -> ()
    %cst_14 = arith.constant dense<0.000000e+00> : vector<2x8x16xf32>
    %46 = tpu.matmul %44, %45, %cst_14 {dimension_numbers = #tpu.dot_dimension_numbers<[2], [1], [1], [2], [0, 0, 0, 1, 1, 2], [0], [0]>} : vector<2x8x8xf32>, vector<2x8x16xf32>, vector<2x8x16xf32> -> vector<2x8x16xf32>
    "tpu.trace_stop"() : () -> ()
    %47 = vector.extract_strided_slice %37 {offsets = [6, 0, 0], sizes = [2, 8, 8], strides = [1, 1, 1]} : vector<8x8x8xf32> to vector<2x8x8xf32>
    %48 = vector.extract_strided_slice %14 {offsets = [0, 0, 48], sizes = [2, 8, 16], strides = [1, 1, 1]} : vector<2x8x64xf32> to vector<2x8x16xf32>
    "tpu.trace_start"() <{level = 10 : i32, message = "blm,bmv->blv"}> : () -> ()
    %cst_15 = arith.constant dense<0.000000e+00> : vector<2x8x16xf32>
    %49 = tpu.matmul %47, %48, %cst_15 {dimension_numbers = #tpu.dot_dimension_numbers<[2], [1], [1], [2], [0, 0, 0, 1, 1, 2], [0], [0]>} : vector<2x8x8xf32>, vector<2x8x16xf32>, vector<2x8x16xf32> -> vector<2x8x16xf32>
    "tpu.trace_stop"() : () -> ()
    %50 = tpu.concatenate %40, %43, %46, %49 in 2 : vector<2x8x16xf32>, vector<2x8x16xf32>, vector<2x8x16xf32>, vector<2x8x16xf32> -> vector<2x8x64xf32>
    %51 = vector.shape_cast %50 : vector<2x8x64xf32> to vector<16x64xf32>
    %c0_16 = arith.constant 0 : index
    %c0_17 = arith.constant 0 : index
    %c0_18 = arith.constant 0 : index
    %52 = vector.load %arg3[%c0_16, %c0_17, %c0_18] : memref<1x64x32xf32, #tpu.memory_space<vmem>>, vector<1x64x32xf32>
    %53 = vector.shape_cast %52 : vector<1x64x32xf32> to vector<64x32xf32>
    %cst_19 = arith.constant dense<0.000000e+00> : vector<16x32xf32>
    %54 = tpu.matmul %51, %53, %cst_19 {dimension_numbers = #tpu.dot_dimension_numbers<[1], [0], [0], [1], [0, 0, 1, 1], [], []>} : vector<16x64xf32>, vector<64x32xf32>, vector<16x32xf32> -> vector<16x32xf32>
    %c0_20 = arith.constant 0 : index
    %c0_21 = arith.constant 0 : index
    %c0_22 = arith.constant 0 : index
    %55 = vector.load %arg4[%c0_20, %c0_21, %c0_22] : memref<1x1x32xf32, #tpu.memory_space<vmem>>, vector<1x1x32xf32>
    %56 = vector.shape_cast %55 : vector<1x1x32xf32> to vector<1x32xf32>
    %57 = vector.broadcast %56 : vector<1x32xf32> to vector<16x32xf32>
    %58 = arith.addf %54, %57 : vector<16x32xf32>
    %59 = arith.addf %58, %3 : vector<16x32xf32>
    %c0_23 = arith.constant 0 : index
    %c0_24 = arith.constant 0 : index
    %c0_25 = arith.constant 0 : index
    %60 = vector.load %arg5[%c0_23, %c0_24, %c0_25] : memref<1x1x32xf32, #tpu.memory_space<vmem>>, vector<1x1x32xf32>
    %61 = vector.shape_cast %60 : vector<1x1x32xf32> to vector<1x32xf32>
    %c0_26 = arith.constant 0 : index
    %c0_27 = arith.constant 0 : index
    %c0_28 = arith.constant 0 : index
    %62 = vector.load %arg6[%c0_26, %c0_27, %c0_28] : memref<1x1x32xf32, #tpu.memory_space<vmem>>, vector<1x1x32xf32>
    %63 = vector.shape_cast %62 : vector<1x1x32xf32> to vector<1x32xf32>
    %cst_29 = arith.constant dense<0.000000e+00> : vector<16xf32>
    %64 = vector.multi_reduction <add>, %59, %cst_29 [1] : vector<16x32xf32> to vector<16xf32>
    %65 = vector.shape_cast %64 : vector<16xf32> to vector<16x1xf32>
    %cst_30 = arith.constant 3.200000e+01 : f32
    %66 = vector.broadcast %cst_30 : f32 to vector<16x1xf32>
    %67 = arith.divf %65, %66 : vector<16x1xf32>
    %68 = vector.broadcast %67 : vector<16x1xf32> to vector<16x32xf32>
    %69 = arith.subf %59, %68 : vector<16x32xf32>
    %70 = arith.mulf %69, %69 : vector<16x32xf32>
    %cst_31 = arith.constant dense<0.000000e+00> : vector<16xf32>
    %71 = vector.multi_reduction <add>, %70, %cst_31 [1] : vector<16x32xf32> to vector<16xf32>
    %72 = vector.shape_cast %71 : vector<16xf32> to vector<16x1xf32>
    %cst_32 = arith.constant 3.200000e+01 : f32
    %73 = vector.broadcast %cst_32 : f32 to vector<16x1xf32>
    %74 = arith.divf %72, %73 : vector<16x1xf32>
    %75 = vector.broadcast %67 : vector<16x1xf32> to vector<16x32xf32>
    %76 = arith.subf %59, %75 : vector<16x32xf32>
    %cst_33 = arith.constant 9.99999974E-6 : f32
    %77 = vector.broadcast %cst_33 : f32 to vector<16x1xf32>
    %78 = arith.addf %74, %77 : vector<16x1xf32>
    %79 = math.rsqrt %78 : vector<16x1xf32>
    %80 = vector.broadcast %79 : vector<16x1xf32> to vector<16x32xf32>
    %81 = arith.mulf %76, %80 : vector<16x32xf32>
    %82 = vector.broadcast %61 : vector<1x32xf32> to vector<16x32xf32>
    %83 = arith.mulf %81, %82 : vector<16x32xf32>
    %84 = vector.broadcast %63 : vector<1x32xf32> to vector<16x32xf32>
    %85 = arith.addf %83, %84 : vector<16x32xf32>
    %c0_34 = arith.constant 0 : index
    %c0_35 = arith.constant 0 : index
    %c0_36 = arith.constant 0 : index
    %86 = vector.load %arg7[%c0_34, %c0_35, %c0_36] : memref<1x32x64xf32, #tpu.memory_space<vmem>>, vector<1x32x64xf32>
    %87 = vector.shape_cast %86 : vector<1x32x64xf32> to vector<32x64xf32>
    %cst_37 = arith.constant dense<0.000000e+00> : vector<16x64xf32>
    %88 = tpu.matmul %85, %87, %cst_37 {dimension_numbers = #tpu.dot_dimension_numbers<[1], [0], [0], [1], [0, 0, 1, 1], [], []>} : vector<16x32xf32>, vector<32x64xf32>, vector<16x64xf32> -> vector<16x64xf32>
    %c0_38 = arith.constant 0 : index
    %c0_39 = arith.constant 0 : index
    %c0_40 = arith.constant 0 : index
    %89 = vector.load %arg8[%c0_38, %c0_39, %c0_40] : memref<1x1x64xf32, #tpu.memory_space<vmem>>, vector<1x1x64xf32>
    %90 = vector.shape_cast %89 : vector<1x1x64xf32> to vector<1x64xf32>
    %91 = vector.broadcast %90 : vector<1x64xf32> to vector<16x64xf32>
    %92 = arith.addf %88, %91 : vector<16x64xf32>
    %cst_41 = arith.constant 0.000000e+00 : f32
    %93 = vector.broadcast %cst_41 : f32 to vector<16x64xf32>
    %94 = arith.maximumf %92, %93 : vector<16x64xf32>
    %c0_42 = arith.constant 0 : index
    %c0_43 = arith.constant 0 : index
    %c0_44 = arith.constant 0 : index
    %95 = vector.load %arg9[%c0_42, %c0_43, %c0_44] : memref<1x64x32xf32, #tpu.memory_space<vmem>>, vector<1x64x32xf32>
    %96 = vector.shape_cast %95 : vector<1x64x32xf32> to vector<64x32xf32>
    %cst_45 = arith.constant dense<0.000000e+00> : vector<16x32xf32>
    %97 = tpu.matmul %94, %96, %cst_45 {dimension_numbers = #tpu.dot_dimension_numbers<[1], [0], [0], [1], [0, 0, 1, 1], [], []>} : vector<16x64xf32>, vector<64x32xf32>, vector<16x32xf32> -> vector<16x32xf32>
    %c0_46 = arith.constant 0 : index
    %c0_47 = arith.constant 0 : index
    %c0_48 = arith.constant 0 : index
    %98 = vector.load %arg10[%c0_46, %c0_47, %c0_48] : memref<1x1x32xf32, #tpu.memory_space<vmem>>, vector<1x1x32xf32>
    %99 = vector.shape_cast %98 : vector<1x1x32xf32> to vector<1x32xf32>
    %100 = vector.broadcast %99 : vector<1x32xf32> to vector<16x32xf32>
    %101 = arith.addf %97, %100 : vector<16x32xf32>
    %102 = arith.addf %101, %85 : vector<16x32xf32>
    %c0_49 = arith.constant 0 : index
    %c0_50 = arith.constant 0 : index
    %c0_51 = arith.constant 0 : index
    %103 = vector.load %arg11[%c0_49, %c0_50, %c0_51] : memref<1x1x32xf32, #tpu.memory_space<vmem>>, vector<1x1x32xf32>
    %104 = vector.shape_cast %103 : vector<1x1x32xf32> to vector<1x32xf32>
    %c0_52 = arith.constant 0 : index
    %c0_53 = arith.constant 0 : index
    %c0_54 = arith.constant 0 : index
    %105 = vector.load %arg12[%c0_52, %c0_53, %c0_54] : memref<1x1x32xf32, #tpu.memory_space<vmem>>, vector<1x1x32xf32>
    %106 = vector.shape_cast %105 : vector<1x1x32xf32> to vector<1x32xf32>
    %cst_55 = arith.constant dense<0.000000e+00> : vector<16xf32>
    %107 = vector.multi_reduction <add>, %102, %cst_55 [1] : vector<16x32xf32> to vector<16xf32>
    %108 = vector.shape_cast %107 : vector<16xf32> to vector<16x1xf32>
    %cst_56 = arith.constant 3.200000e+01 : f32
    %109 = vector.broadcast %cst_56 : f32 to vector<16x1xf32>
    %110 = arith.divf %108, %109 : vector<16x1xf32>
    %111 = vector.broadcast %110 : vector<16x1xf32> to vector<16x32xf32>
    %112 = arith.subf %102, %111 : vector<16x32xf32>
    %113 = arith.mulf %112, %112 : vector<16x32xf32>
    %cst_57 = arith.constant dense<0.000000e+00> : vector<16xf32>
    %114 = vector.multi_reduction <add>, %113, %cst_57 [1] : vector<16x32xf32> to vector<16xf32>
    %115 = vector.shape_cast %114 : vector<16xf32> to vector<16x1xf32>
    %cst_58 = arith.constant 3.200000e+01 : f32
    %116 = vector.broadcast %cst_58 : f32 to vector<16x1xf32>
    %117 = arith.divf %115, %116 : vector<16x1xf32>
    %118 = vector.broadcast %110 : vector<16x1xf32> to vector<16x32xf32>
    %119 = arith.subf %102, %118 : vector<16x32xf32>
    %cst_59 = arith.constant 9.99999974E-6 : f32
    %120 = vector.broadcast %cst_59 : f32 to vector<16x1xf32>
    %121 = arith.addf %117, %120 : vector<16x1xf32>
    %122 = math.rsqrt %121 : vector<16x1xf32>
    %123 = vector.broadcast %122 : vector<16x1xf32> to vector<16x32xf32>
    %124 = arith.mulf %119, %123 : vector<16x32xf32>
    %125 = vector.broadcast %104 : vector<1x32xf32> to vector<16x32xf32>
    %126 = arith.mulf %124, %125 : vector<16x32xf32>
    %127 = vector.broadcast %106 : vector<1x32xf32> to vector<16x32xf32>
    %128 = arith.addf %126, %127 : vector<16x32xf32>
    %c0_60 = arith.constant 0 : index
    %c0_61 = arith.constant 0 : index
    %129 = vector.load %arg14[%c0_60, %c0_61] : memref<16x32xf32, #tpu.memory_space<vmem>>, vector<16x32xf32>
    tpu.vector_store %arg14[%c0_60, %c0_61], %128 {strides = array<i32>} : memref<16x32xf32, #tpu.memory_space<vmem>>, vector<16x32xf32>,
    %c1_i32 = arith.constant 1 : i32
    %130 = arith.cmpi eq, %arg0, %c1_i32 : i32
    %131 = arith.extui %130 : i1 to i32
    %c0_i32_62 = arith.constant 0 : i32
    %132 = arith.cmpi ne, %131, %c0_i32_62 : i32
    scf.if %132 {
      %133 = vector.shape_cast %128 : vector<16x32xf32> to vector<2x8x32xf32>
      %c0_63 = arith.constant 0 : index
      %c0_64 = arith.constant 0 : index
      %c0_65 = arith.constant 0 : index
      %134 = vector.load %arg13[%c0_63, %c0_64, %c0_65] : memref<2x8x32xf32, #tpu.memory_space<vmem>>, vector<2x8x32xf32>
      tpu.vector_store %arg13[%c0_63, %c0_64, %c0_65], %133 {strides = array<i32>} : memref<2x8x32xf32, #tpu.memory_space<vmem>>, vector<2x8x32xf32>,
    } else {
    }
    return
  }
  func.func @transform_0(%arg0: i32) -> (i32, i32, i32) {
    %c0_i32 = arith.constant 0 : i32
    %c0_i32_0 = arith.constant 0 : i32
    %c0_i32_1 = arith.constant 0 : i32
    %c0_i32_2 = arith.constant 0 : i32
    return %c0_i32, %c0_i32_0, %c0_i32_1 : i32, i32, i32
  }
  func.func @transform_1(%arg0: i32) -> (i32, i32, i32) {
    %c0_i32 = arith.constant 0 : i32
    %c0_i32_0 = arith.constant 0 : i32
    %c0_i32_1 = arith.constant 0 : i32
    return %arg0, %c0_i32, %c0_i32_0 : i32, i32, i32
  }
  func.func @transform_2(%arg0: i32) -> (i32, i32, i32) {
    %c0_i32 = arith.constant 0 : i32
    %c0_i32_0 = arith.constant 0 : i32
    %c0_i32_1 = arith.constant 0 : i32
    return %arg0, %c0_i32, %c0_i32_0 : i32, i32, i32
  }
  func.func @transform_3(%arg0: i32) -> (i32, i32, i32) {
    %c0_i32 = arith.constant 0 : i32
    %c0_i32_0 = arith.constant 0 : i32
    %c0_i32_1 = arith.constant 0 : i32
    return %arg0, %c0_i32, %c0_i32_0 : i32, i32, i32
  }
  func.func @transform_4(%arg0: i32) -> (i32, i32, i32) {
    %c0_i32 = arith.constant 0 : i32
    %c0_i32_0 = arith.constant 0 : i32
    %c0_i32_1 = arith.constant 0 : i32
    return %arg0, %c0_i32, %c0_i32_0 : i32, i32, i32
  }
  func.func @transform_5(%arg0: i32) -> (i32, i32, i32) {
    %c0_i32 = arith.constant 0 : i32
    %c0_i32_0 = arith.constant 0 : i32
    %c0_i32_1 = arith.constant 0 : i32
    return %arg0, %c0_i32, %c0_i32_0 : i32, i32, i32
  }
  func.func @transform_6(%arg0: i32) -> (i32, i32, i32) {
    %c0_i32 = arith.constant 0 : i32
    %c0_i32_0 = arith.constant 0 : i32
    %c0_i32_1 = arith.constant 0 : i32
    return %arg0, %c0_i32, %c0_i32_0 : i32, i32, i32
  }
  func.func @transform_7(%arg0: i32) -> (i32, i32, i32) {
    %c0_i32 = arith.constant 0 : i32
    %c0_i32_0 = arith.constant 0 : i32
    %c0_i32_1 = arith.constant 0 : i32
    return %arg0, %c0_i32, %c0_i32_0 : i32, i32, i32
  }
  func.func @transform_8(%arg0: i32) -> (i32, i32, i32) {
    %c0_i32 = arith.constant 0 : i32
    %c0_i32_0 = arith.constant 0 : i32
    %c0_i32_1 = arith.constant 0 : i32
    return %arg0, %c0_i32, %c0_i32_0 : i32, i32, i32
  }
  func.func @transform_9(%arg0: i32) -> (i32, i32, i32) {
    %c0_i32 = arith.constant 0 : i32
    %c0_i32_0 = arith.constant 0 : i32
    %c0_i32_1 = arith.constant 0 : i32
    return %arg0, %c0_i32, %c0_i32_0 : i32, i32, i32
  }
  func.func @transform_10(%arg0: i32) -> (i32, i32, i32) {
    %c0_i32 = arith.constant 0 : i32
    %c0_i32_0 = arith.constant 0 : i32
    %c0_i32_1 = arith.constant 0 : i32
    return %arg0, %c0_i32, %c0_i32_0 : i32, i32, i32
  }
  func.func @transform_11(%arg0: i32) -> (i32, i32, i32) {
    %c0_i32 = arith.constant 0 : i32
    %c0_i32_0 = arith.constant 0 : i32
    %c0_i32_1 = arith.constant 0 : i32
    return %arg0, %c0_i32, %c0_i32_0 : i32, i32, i32
  }
  func.func @transform_12(%arg0: i32) -> (i32, i32, i32) {
    %c0_i32 = arith.constant 0 : i32
    %c0_i32_0 = arith.constant 0 : i32
    %c0_i32_1 = arith.constant 0 : i32
    %c0_i32_2 = arith.constant 0 : i32
    return %c0_i32, %c0_i32_0, %c0_i32_1 : i32, i32, i32
  }
}

</mosaic_0001>

<llo_original>
// kernel: tpu_custom_call.1
$region0: #{tpu_custom_call.1}
  #allocation0 [shape = 'u32[]', space=smem, size = 0x4, offset = 0x4, fixed_abs, tag = 'smem constant byte address 0x4 - core index']
  #allocation1 [shape = 'u32[144,128]{1,0:T(1,128)}', space=vmem, size = 0x12000, scoped, tag = 'internal scratch']
  #allocation2 [shape = 'f32[16,32]{1,0:T(8,128)}', space=vmem, size = 0x2000, scoped, tag = 'scratch operand']
  %s0 = inlined_call_operand.vmem [shape: f32[2,8,32], index: 0, kind: input, shape index: {}]
  %s1 = inlined_call_operand.vmem [shape: f32[2,32,192], index: 1, kind: input, shape index: {}]
  %s2 = inlined_call_operand.vmem [shape: f32[2,64,32], index: 2, kind: input, shape index: {}]
  %s3 = inlined_call_operand.vmem [shape: f32[2,1,32], index: 3, kind: input, shape index: {}]
  %s4 = inlined_call_operand.vmem [shape: f32[2,1,32], index: 4, kind: input, shape index: {}]
  %s5 = inlined_call_operand.vmem [shape: f32[2,1,32], index: 5, kind: input, shape index: {}]
  %s6 = inlined_call_operand.vmem [shape: f32[2,32,64], index: 6, kind: input, shape index: {}]
  %s7 = inlined_call_operand.vmem [shape: f32[2,1,64], index: 7, kind: input, shape index: {}]
  %s8 = inlined_call_operand.vmem [shape: f32[2,64,32], index: 8, kind: input, shape index: {}]
  %s9 = inlined_call_operand.vmem [shape: f32[2,1,32], index: 9, kind: input, shape index: {}]
  %s10 = inlined_call_operand.vmem [shape: f32[2,1,32], index: 10, kind: input, shape index: {}]
  %s11 = inlined_call_operand.vmem [shape: f32[2,1,32], index: 11, kind: input, shape index: {}]
  %s12 = inlined_call_operand.hbm [shape: f32[2,8,32], index: 12, kind: output, shape index: {}]
  %s13 = sld [smem:[#allocation0]]
  $region89: #{tpu_custom_call.1} parent=0
    _
  %s15 = ssub.s32 1, %s13
  %s16 = scalar_select 0, %s15, %s13
  $region1: #{tpu_custom_call.1} parent=0
    #allocation3 [shape = 'u8[8192]{0}', space=vmem, size = 0x2000, scoped, tag = 'output window, operand 0, single buffered']
    #allocation4 [shape = 's32[2]{0}', space=sflag, size = 0x8, scoped, tag = 'scoped memory for tpu_custom_call.1']
    %17 = vsyncpa [#allocation4], 0
    loop: start=0, step=1, limit=4
    $region2: #{tpu_custom_call.1} parent=1 // loop_pre_header
      _
    $region3: #{tpu_custom_call.1} parent=1 // loop_header
      %s19 = sphi 0, %s23
      %p20 = scmp.ge.s32.totalorder %s19, 4
      %s27 = sphi 0, %s27
      %s29 = sphi 0, %s27
      %s30 = sphi 0, %s29
      %s44 = sphi 0, %s30
      %s50 = sphi 0, %s52
      %s53 = sphi 0, %s50
      %s54 = sphi 0, %s53
      %s70 = sphi 0, %s54
      %s76 = sphi 0, %s78
      %s79 = sphi 0, %s76
      %s80 = sphi 0, %s79
      %s96 = sphi 0, %s80
      %s102 = sphi 0, %s104
      %s105 = sphi 0, %s102
      %s106 = sphi 0, %s105
      %s122 = sphi 0, %s106
      %s128 = sphi 0, %s130
      %s131 = sphi 0, %s128
      %s132 = sphi 0, %s131
      %s148 = sphi 0, %s132
      %s154 = sphi 0, %s156
      %s157 = sphi 0, %s154
      %s158 = sphi 0, %s157
      %s174 = sphi 0, %s158
      %s180 = sphi 0, %s182
      %s183 = sphi 0, %s180
      %s184 = sphi 0, %s183
      %s200 = sphi 0, %s184
      %s206 = sphi 0, %s208
      %s209 = sphi 0, %s206
      %s210 = sphi 0, %s209
      %s226 = sphi 0, %s210
      %s232 = sphi 0, %s234
      %s235 = sphi 0, %s232
      %s236 = sphi 0, %s235
      %s252 = sphi 0, %s236
      %s258 = sphi 0, %s260
      %s261 = sphi 0, %s258
      %s262 = sphi 0, %s261
      %s278 = sphi 0, %s262
      %s284 = sphi 0, %s286
      %s287 = sphi 0, %s284
      %s288 = sphi 0, %s287
      %s304 = sphi 0, %s288
      %s310 = sphi 0, %s312
      %s313 = sphi 0, %s310
      %s314 = sphi 0, %s313
      %s330 = sphi 0, %s314
      %s334 = sphi 0, %s334
      %s336 = sphi 0, %s334
      %s337 = sphi 0, %s336
      %s351 = sphi 0, %s337
    $region4: #{tpu_custom_call.1} parent=1 // loop_header_branch
      %22 = sbr.rel (%p20) target = $region8
    $region5: #{tpu_custom_call.1} parent=1 // loop_body
      %s24 = ssub.s32 %s19, 1
      %s25 = ssub.s32 %s19, 2
      %s26 = sadd.s32 %s19, 1
      %s28 = sadd.s32 %s27, 1
      %p31 = scmp.eq.s32.totalorder %s19, 1
      %p32 = scmp.ne.s32.totalorder %s27, %s29
      %p33 = scmp.eq.s32.totalorder %s19, 0
      %p34 = por %p32, %p33
      %p35 = scmp.ne.s32.totalorder %s27, %s29
      %p36 = scmp.eq.s32.totalorder %s24, 1
      %p37 = por %p35, %p36
      %p38 = scmp.ne.s32.totalorder %s29, %s30
      %p39 = scmp.eq.s32.totalorder %s24, 0
      %p40 = por %p38, %p39
      %p41 = scmp.ne.s32.totalorder %s29, %s30
      %p42 = scmp.eq.s32.totalorder %s25, 1
      %p43 = por %p41, %p42
      %p45 = scmp.ne.s32.totalorder %s30, %s44
      %p46 = scmp.eq.s32.totalorder %s25, 0
      %p47 = por %p45, %p46
      %s48 = ssub.s32 %s19, %s26
      %p49 = scmp.eq.s32.totalorder %s48, 0
      %s51 = sadd.s32 %s50, 1
      %s52 = scalar_select %p49, %s50, %s51
      %p55 = pneg %p49
      %p56 = scmp.eq.s32.totalorder %s19, 1
      %p57 = por %p55, %p56
      %p58 = scmp.ne.s32.totalorder %s50, %s53
      %p59 = scmp.eq.s32.totalorder %s19, 0
      %p60 = por %p58, %p59
      %p61 = scmp.ne.s32.totalorder %s50, %s53
      %p62 = scmp.eq.s32.totalorder %s24, 1
      %p63 = por %p61, %p62
      %p64 = scmp.ne.s32.totalorder %s53, %s54
      %p65 = scmp.eq.s32.totalorder %s24, 0
      %p66 = por %p64, %p65
      %p67 = scmp.ne.s32.totalorder %s53, %s54
      %p68 = scmp.eq.s32.totalorder %s25, 1
      %p69 = por %p67, %p68
      %p71 = scmp.ne.s32.totalorder %s54, %s70
      %p72 = scmp.eq.s32.totalorder %s25, 0
      %p73 = por %p71, %p72
      %s74 = ssub.s32 %s19, %s26
      %p75 = scmp.eq.s32.totalorder %s74, 0
      %s77 = sadd.s32 %s76, 1
      %s78 = scalar_select %p75, %s76, %s77
      %p81 = pneg %p75
      %p82 = scmp.eq.s32.totalorder %s19, 1
      %p83 = por %p81, %p82
      %p84 = scmp.ne.s32.totalorder %s76, %s79
      %p85 = scmp.eq.s32.totalorder %s19, 0
      %p86 = por %p84, %p85
      %p87 = scmp.ne.s32.totalorder %s76, %s79
      %p88 = scmp.eq.s32.totalorder %s24, 1
      %p89 = por %p87, %p88
      %p90 = scmp.ne.s32.totalorder %s79, %s80
      %p91 = scmp.eq.s32.totalorder %s24, 0
      %p92 = por %p90, %p91
      %p93 = scmp.ne.s32.totalorder %s79, %s80
      %p94 = scmp.eq.s32.totalorder %s25, 1
      %p95 = por %p93, %p94
      %p97 = scmp.ne.s32.totalorder %s80, %s96
      %p98 = scmp.eq.s32.totalorder %s25, 0
      %p99 = por %p97, %p98
      %s100 = ssub.s32 %s19, %s26
      %p101 = scmp.eq.s32.totalorder %s100, 0
      %s103 = sadd.s32 %s102, 1
      %s104 = scalar_select %p101, %s102, %s103
      %p107 = pneg %p101
      %p108 = scmp.eq.s32.totalorder %s19, 1
      %p109 = por %p107, %p108
      %p110 = scmp.ne.s32.totalorder %s102, %s105
      %p111 = scmp.eq.s32.totalorder %s19, 0
      %p112 = por %p110, %p111
      %p113 = scmp.ne.s32.totalorder %s102, %s105
      %p114 = scmp.eq.s32.totalorder %s24, 1
      %p115 = por %p113, %p114
      %p116 = scmp.ne.s32.totalorder %s105, %s106
      %p117 = scmp.eq.s32.totalorder %s24, 0
      %p118 = por %p116, %p117
      %p119 = scmp.ne.s32.totalorder %s105, %s106
      %p120 = scmp.eq.s32.totalorder %s25, 1
      %p121 = por %p119, %p120
      %p123 = scmp.ne.s32.totalorder %s106, %s122
      %p124 = scmp.eq.s32.totalorder %s25, 0
      %p125 = por %p123, %p124
      %s126 = ssub.s32 %s19, %s26
      %p127 = scmp.eq.s32.totalorder %s126, 0
      %s129 = sadd.s32 %s128, 1
      %s130 = scalar_select %p127, %s128, %s129
      %p133 = pneg %p127
      %p134 = scmp.eq.s32.totalorder %s19, 1
      %p135 = por %p133, %p134
      %p136 = scmp.ne.s32.totalorder %s128, %s131
      %p137 = scmp.eq.s32.totalorder %s19, 0
      %p138 = por %p136, %p137
      %p139 = scmp.ne.s32.totalorder %s128, %s131
      %p140 = scmp.eq.s32.totalorder %s24, 1
      %p141 = por %p139, %p140
      %p142 = scmp.ne.s32.totalorder %s131, %s132
      %p143 = scmp.eq.s32.totalorder %s24, 0
      %p144 = por %p142, %p143
      %p145 = scmp.ne.s32.totalorder %s131, %s132
      %p146 = scmp.eq.s32.totalorder %s25, 1
      %p147 = por %p145, %p146
      %p149 = scmp.ne.s32.totalorder %s132, %s148
      %p150 = scmp.eq.s32.totalorder %s25, 0
      %p151 = por %p149, %p150
      %s152 = ssub.s32 %s19, %s26
      %p153 = scmp.eq.s32.totalorder %s152, 0
      %s155 = sadd.s32 %s154, 1
      %s156 = scalar_select %p153, %s154, %s155
      %p159 = pneg %p153
      %p160 = scmp.eq.s32.totalorder %s19, 1
      %p161 = por %p159, %p160
      %p162 = scmp.ne.s32.totalorder %s154, %s157
      %p163 = scmp.eq.s32.totalorder %s19, 0
      %p164 = por %p162, %p163
      %p165 = scmp.ne.s32.totalorder %s154, %s157
      %p166 = scmp.eq.s32.totalorder %s24, 1
      %p167 = por %p165, %p166
      %p168 = scmp.ne.s32.totalorder %s157, %s158
      %p169 = scmp.eq.s32.totalorder %s24, 0
      %p170 = por %p168, %p169
      %p171 = scmp.ne.s32.totalorder %s157, %s158
      %p172 = scmp.eq.s32.totalorder %s25, 1
      %p173 = por %p171, %p172
      %p175 = scmp.ne.s32.totalorder %s158, %s174
      %p176 = scmp.eq.s32.totalorder %s25, 0
      %p177 = por %p175, %p176
      %s178 = ssub.s32 %s19, %s26
      %p179 = scmp.eq.s32.totalorder %s178, 0
      %s181 = sadd.s32 %s180, 1
      %s182 = scalar_select %p179, %s180, %s181
      %p185 = pneg %p179
      %p186 = scmp.eq.s32.totalorder %s19, 1
      %p187 = por %p185, %p186
      %p188 = scmp.ne.s32.totalorder %s180, %s183
      %p189 = scmp.eq.s32.totalorder %s19, 0
      %p190 = por %p188, %p189
      %p191 = scmp.ne.s32.totalorder %s180, %s183
      %p192 = scmp.eq.s32.totalorder %s24, 1
      %p193 = por %p191, %p192
      %p194 = scmp.ne.s32.totalorder %s183, %s184
      %p195 = scmp.eq.s32.totalorder %s24, 0
      %p196 = por %p194, %p195
      %p197 = scmp.ne.s32.totalorder %s183, %s184
      %p198 = scmp.eq.s32.totalorder %s25, 1
      %p199 = por %p197, %p198
      %p201 = scmp.ne.s32.totalorder %s184, %s200
      %p202 = scmp.eq.s32.totalorder %s25, 0
      %p203 = por %p201, %p202
      %s204 = ssub.s32 %s19, %s26
      %p205 = scmp.eq.s32.totalorder %s204, 0
      %s207 = sadd.s32 %s206, 1
      %s208 = scalar_select %p205, %s206, %s207
      %p211 = pneg %p205
      %p212 = scmp.eq.s32.totalorder %s19, 1
      %p213 = por %p211, %p212
      %p214 = scmp.ne.s32.totalorder %s206, %s209
      %p215 = scmp.eq.s32.totalorder %s19, 0
      %p216 = por %p214, %p215
      %p217 = scmp.ne.s32.totalorder %s206, %s209
      %p218 = scmp.eq.s32.totalorder %s24, 1
      %p219 = por %p217, %p218
      %p220 = scmp.ne.s32.totalorder %s209, %s210
      %p221 = scmp.eq.s32.totalorder %s24, 0
      %p222 = por %p220, %p221
      %p223 = scmp.ne.s32.totalorder %s209, %s210
      %p224 = scmp.eq.s32.totalorder %s25, 1
      %p225 = por %p223, %p224
      %p227 = scmp.ne.s32.totalorder %s210, %s226
      %p228 = scmp.eq.s32.totalorder %s25, 0
      %p229 = por %p227, %p228
      %s230 = ssub.s32 %s19, %s26
      %p231 = scmp.eq.s32.totalorder %s230, 0
      %s233 = sadd.s32 %s232, 1
      %s234 = scalar_select %p231, %s232, %s233
      %p237 = pneg %p231
      %p238 = scmp.eq.s32.totalorder %s19, 1
      %p239 = por %p237, %p238
      %p240 = scmp.ne.s32.totalorder %s232, %s235
      %p241 = scmp.eq.s32.totalorder %s19, 0
      %p242 = por %p240, %p241
      %p243 = scmp.ne.s32.totalorder %s232, %s235
      %p244 = scmp.eq.s32.totalorder %s24, 1
      %p245 = por %p243, %p244
      %p246 = scmp.ne.s32.totalorder %s235, %s236
      %p247 = scmp.eq.s32.totalorder %s24, 0
      %p248 = por %p246, %p247
      %p249 = scmp.ne.s32.totalorder %s235, %s236
      %p250 = scmp.eq.s32.totalorder %s25, 1
      %p251 = por %p249, %p250
      %p253 = scmp.ne.s32.totalorder %s236, %s252
      %p254 = scmp.eq.s32.totalorder %s25, 0
      %p255 = por %p253, %p254
      %s256 = ssub.s32 %s19, %s26
      %p257 = scmp.eq.s32.totalorder %s256, 0
      %s259 = sadd.s32 %s258, 1
      %s260 = scalar_select %p257, %s258, %s259
      %p263 = pneg %p257
      %p264 = scmp.eq.s32.totalorder %s19, 1
      %p265 = por %p263, %p264
      %p266 = scmp.ne.s32.totalorder %s258, %s261
      %p267 = scmp.eq.s32.totalorder %s19, 0
      %p268 = por %p266, %p267
      %p269 = scmp.ne.s32.totalorder %s258, %s261
      %p270 = scmp.eq.s32.totalorder %s24, 1
      %p271 = por %p269, %p270
      %p272 = scmp.ne.s32.totalorder %s261, %s262
      %p273 = scmp.eq.s32.totalorder %s24, 0
      %p274 = por %p272, %p273
      %p275 = scmp.ne.s32.totalorder %s261, %s262
      %p276 = scmp.eq.s32.totalorder %s25, 1
      %p277 = por %p275, %p276
      %p279 = scmp.ne.s32.totalorder %s262, %s278
      %p280 = scmp.eq.s32.totalorder %s25, 0
      %p281 = por %p279, %p280
      %s282 = ssub.s32 %s19, %s26
      %p283 = scmp.eq.s32.totalorder %s282, 0
      %s285 = sadd.s32 %s284, 1
      %s286 = scalar_select %p283, %s284, %s285
      %p289 = pneg %p283
      %p290 = scmp.eq.s32.totalorder %s19, 1
      %p291 = por %p289, %p290
      %p292 = scmp.ne.s32.totalorder %s284, %s287
      %p293 = scmp.eq.s32.totalorder %s19, 0
      %p294 = por %p292, %p293
      %p295 = scmp.ne.s32.totalorder %s284, %s287
      %p296 = scmp.eq.s32.totalorder %s24, 1
      %p297 = por %p295, %p296
      %p298 = scmp.ne.s32.totalorder %s287, %s288
      %p299 = scmp.eq.s32.totalorder %s24, 0
      %p300 = por %p298, %p299
      %p301 = scmp.ne.s32.totalorder %s287, %s288
      %p302 = scmp.eq.s32.totalorder %s25, 1
      %p303 = por %p301, %p302
      %p305 = scmp.ne.s32.totalorder %s288, %s304
      %p306 = scmp.eq.s32.totalorder %s25, 0
      %p307 = por %p305, %p306
      %s308 = ssub.s32 %s19, %s26
      %p309 = scmp.eq.s32.totalorder %s308, 0
      %s311 = sadd.s32 %s310, 1
      %s312 = scalar_select %p309, %s310, %s311
      %p315 = pneg %p309
      %p316 = scmp.eq.s32.totalorder %s19, 1
      %p317 = por %p315, %p316
      %p318 = scmp.ne.s32.totalorder %s310, %s313
      %p319 = scmp.eq.s32.totalorder %s19, 0
      %p320 = por %p318, %p319
      %p321 = scmp.ne.s32.totalorder %s310, %s313
      %p322 = scmp.eq.s32.totalorder %s24, 1
      %p323 = por %p321, %p322
      %p324 = scmp.ne.s32.totalorder %s313, %s314
      %p325 = scmp.eq.s32.totalorder %s24, 0
      %p326 = por %p324, %p325
      %p327 = scmp.ne.s32.totalorder %s313, %s314
      %p328 = scmp.eq.s32.totalorder %s25, 1
      %p329 = por %p327, %p328
      %p331 = scmp.ne.s32.totalorder %s314, %s330
      %p332 = scmp.eq.s32.totalorder %s25, 0
      %p333 = por %p331, %p332
      %s335 = sadd.s32 %s334, 1
      %p338 = scmp.eq.s32.totalorder %s19, 1
      %p339 = scmp.ne.s32.totalorder %s334, %s336
      %p340 = scmp.eq.s32.totalorder %s19, 0
      %p341 = por %p339, %p340
      %p342 = scmp.ne.s32.totalorder %s334, %s336
      %p343 = scmp.eq.s32.totalorder %s24, 1
      %p344 = por %p342, %p343
      %p345 = scmp.ne.s32.totalorder %s336, %s337
      %p346 = scmp.eq.s32.totalorder %s24, 0
      %p347 = por %p345, %p346
      %p348 = scmp.ne.s32.totalorder %s336, %s337
      %p349 = scmp.eq.s32.totalorder %s25, 1
      %p350 = por %p348, %p349
      %p352 = scmp.ne.s32.totalorder %s337, %s351
      %p353 = scmp.eq.s32.totalorder %s25, 0
      %p354 = por %p352, %p353
      %p355 = scmp.le.s32.totalorder 1, %s19
      %p356 = scmp.lt.s32.totalorder %s19, 3
      %p357 = pnand %p355, %p356
      %p358 = pneg %p357
      // Predicated region
      $region9: #{tpu_custom_call.1} parent=5 // pred_check
        _
      $region10: #{tpu_custom_call.1} parent=5 // pred_check_branch
        %360 = sbr.rel (%p357) target = $region12
      $region11: #{tpu_custom_call.1} parent=5 // pred_region
        %s361 = ssub.s32 %s19, 1
        // Predicated region
        $region13: #{tpu_custom_call.1} parent=11 // pred_check
          %p362 = pneg %p40
        $region14: #{tpu_custom_call.1} parent=11 // pred_check_branch
          %364 = sbr.rel (%p362) target = $region16
        $region15: #{tpu_custom_call.1} parent=11 // pred_region
          _
        $region16: #{tpu_custom_call.1} parent=11 // pred_fallthru
          _
      $region12: #{tpu_custom_call.1} parent=5 // pred_fallthru
        _
      %p365 = scmp.lt.s32.totalorder %s19, 2
      // Predicated region
      $region17: #{tpu_custom_call.1} parent=5 // pred_check
        %p366 = pneg %p365
      $region18: #{tpu_custom_call.1} parent=5 // pred_check_branch
        %368 = sbr.rel (%p366) target = $region20
      $region19: #{tpu_custom_call.1} parent=5 // pred_region
        // Predicated region
        $region21: #{tpu_custom_call.1} parent=19 // pred_check
          %p369 = pneg %p60
        $region22: #{tpu_custom_call.1} parent=19 // pred_check_branch
          %371 = sbr.rel (%p369) target = $region24
        $region23: #{tpu_custom_call.1} parent=19 // pred_region
          %p372 = scmp.lt.s32.totalorder %s19, 1
          %s373 = scalar_select %p372, %s19, 1
          %s374 = smul.addr %s373, 8
          %s375 = smul.addr %s374, 8
          %s376 = scalar_lea.vmem %s1, %s375
        $region24: #{tpu_custom_call.1} parent=19 // pred_fallthru
          _
        // Predicated region
        $region25: #{tpu_custom_call.1} parent=19 // pred_check
          %p377 = pneg %p86
        $region26: #{tpu_custom_call.1} parent=19 // pred_check_branch
          %379 = sbr.rel (%p377) target = $region28
        $region27: #{tpu_custom_call.1} parent=19 // pred_region
          %p380 = scmp.lt.s32.totalorder %s19, 1
          %s381 = scalar_select %p380, %s19, 1
          %s382 = smul.addr %s381, 8
          %s383 = smul.addr %s382, 8
          %s384 = scalar_lea.vmem %s2, %s383
        $region28: #{tpu_custom_call.1} parent=19 // pred_fallthru
          _
        // Predicated region
        $region29: #{tpu_custom_call.1} parent=19 // pred_check
          %p385 = pneg %p112
        $region30: #{tpu_custom_call.1} parent=19 // pred_check_branch
          %387 = sbr.rel (%p385) target = $region32
        $region31: #{tpu_custom_call.1} parent=19 // pred_region
          %p388 = scmp.lt.s32.totalorder %s19, 1
          %s389 = scalar_select %p388, %s19, 1
          %s390 = scalar_lea.vmem %s3, %s389
        $region32: #{tpu_custom_call.1} parent=19 // pred_fallthru
          _
        // Predicated region
        $region33: #{tpu_custom_call.1} parent=19 // pred_check
          %p391 = pneg %p138
        $region34: #{tpu_custom_call.1} parent=19 // pred_check_branch
          %393 = sbr.rel (%p391) target = $region36
        $region35: #{tpu_custom_call.1} parent=19 // pred_region
          %p394 = scmp.lt.s32.totalorder %s19, 1
          %s395 = scalar_select %p394, %s19, 1
          %s396 = scalar_lea.vmem %s4, %s395
        $region36: #{tpu_custom_call.1} parent=19 // pred_fallthru
          _
        // Predicated region
        $region37: #{tpu_custom_call.1} parent=19 // pred_check
          %p397 = pneg %p164
        $region38: #{tpu_custom_call.1} parent=19 // pred_check_branch
          %399 = sbr.rel (%p397) target = $region40
        $region39: #{tpu_custom_call.1} parent=19 // pred_region
          %p400 = scmp.lt.s32.totalorder %s19, 1
          %s401 = scalar_select %p400, %s19, 1
          %s402 = scalar_lea.vmem %s5, %s401
        $region40: #{tpu_custom_call.1} parent=19 // pred_fallthru
          _
        // Predicated region
        $region41: #{tpu_custom_call.1} parent=19 // pred_check
          %p403 = pneg %p190
        $region42: #{tpu_custom_call.1} parent=19 // pred_check_branch
          %405 = sbr.rel (%p403) target = $region44
        $region43: #{tpu_custom_call.1} parent=19 // pred_region
          %p406 = scmp.lt.s32.totalorder %s19, 1
          %s407 = scalar_select %p406, %s19, 1
          %s408 = smul.addr %s407, 4
          %s409 = smul.addr %s408, 8
          %s410 = scalar_lea.vmem %s6, %s409
        $region44: #{tpu_custom_call.1} parent=19 // pred_fallthru
          _
        // Predicated region
        $region45: #{tpu_custom_call.1} parent=19 // pred_check
          %p411 = pneg %p216
        $region46: #{tpu_custom_call.1} parent=19 // pred_check_branch
          %413 = sbr.rel (%p411) target = $region48
        $region47: #{tpu_custom_call.1} parent=19 // pred_region
          %p414 = scmp.lt.s32.totalorder %s19, 1
          %s415 = scalar_select %p414, %s19, 1
          %s416 = scalar_lea.vmem %s7, %s415
        $region48: #{tpu_custom_call.1} parent=19 // pred_fallthru
          _
        // Predicated region
        $region49: #{tpu_custom_call.1} parent=19 // pred_check
          %p417 = pneg %p242
        $region50: #{tpu_custom_call.1} parent=19 // pred_check_branch
          %419 = sbr.rel (%p417) target = $region52
        $region51: #{tpu_custom_call.1} parent=19 // pred_region
          %p420 = scmp.lt.s32.totalorder %s19, 1
          %s421 = scalar_select %p420, %s19, 1
          %s422 = smul.addr %s421, 8
          %s423 = smul.addr %s422, 8
          %s424 = scalar_lea.vmem %s8, %s423
        $region52: #{tpu_custom_call.1} parent=19 // pred_fallthru
          _
        // Predicated region
        $region53: #{tpu_custom_call.1} parent=19 // pred_check
          %p425 = pneg %p268
        $region54: #{tpu_custom_call.1} parent=19 // pred_check_branch
          %427 = sbr.rel (%p425) target = $region56
        $region55: #{tpu_custom_call.1} parent=19 // pred_region
          %p428 = scmp.lt.s32.totalorder %s19, 1
          %s429 = scalar_select %p428, %s19, 1
          %s430 = scalar_lea.vmem %s9, %s429
        $region56: #{tpu_custom_call.1} parent=19 // pred_fallthru
          _
        // Predicated region
        $region57: #{tpu_custom_call.1} parent=19 // pred_check
          %p431 = pneg %p294
        $region58: #{tpu_custom_call.1} parent=19 // pred_check_branch
          %433 = sbr.rel (%p431) target = $region60
        $region59: #{tpu_custom_call.1} parent=19 // pred_region
          %p434 = scmp.lt.s32.totalorder %s19, 1
          %s435 = scalar_select %p434, %s19, 1
          %s436 = scalar_lea.vmem %s10, %s435
        $region60: #{tpu_custom_call.1} parent=19 // pred_fallthru
          _
        // Predicated region
        $region61: #{tpu_custom_call.1} parent=19 // pred_check
          %p437 = pneg %p320
        $region62: #{tpu_custom_call.1} parent=19 // pred_check_branch
          %439 = sbr.rel (%p437) target = $region64
        $region63: #{tpu_custom_call.1} parent=19 // pred_region
          %p440 = scmp.lt.s32.totalorder %s19, 1
          %s441 = scalar_select %p440, %s19, 1
          %s442 = scalar_lea.vmem %s11, %s441
        $region64: #{tpu_custom_call.1} parent=19 // pred_fallthru
          _
      $region20: #{tpu_custom_call.1} parent=5 // pred_fallthru
        _
      %p443 = scmp.le.s32.totalorder 1, %s19
      %p444 = scmp.lt.s32.totalorder %s19, 3
      %p445 = pnand %p443, %p444
      %p446 = pneg %p445
      // Predicated region
      $region65: #{tpu_custom_call.1} parent=5 // pred_check
        _
      $region66: #{tpu_custom_call.1} parent=5 // pred_check_branch
        %448 = sbr.rel (%p445) target = $region68
      $region67: #{tpu_custom_call.1} parent=5 // pred_region
        %s449 = ssub.s32 %s19, 1
        %p450 = pneg %p40
        %p451 = pneg %p37
        %p452 = scmp.lt.s32.totalorder %s24, 1
        %s453 = scalar_select %p452, %s24, 1
        %s454 = smul.addr %s453, 8
        %s455 = smul.addr %s454, 8
        %s456 = scalar_lea.vmem %s1, %s455
        %p457 = pneg %p66
        %p458 = pneg %p63
        %p459 = scmp.lt.s32.totalorder %s24, 1
        %s460 = scalar_select %p459, %s24, 1
        %s461 = smul.addr %s460, 8
        %s462 = smul.addr %s461, 8
        %s463 = scalar_lea.vmem %s2, %s462
        %p464 = pneg %p92
        %p465 = pneg %p89
        %p466 = scmp.lt.s32.totalorder %s24, 1
        %s467 = scalar_select %p466, %s24, 1
        %s468 = scalar_lea.vmem %s3, %s467
        %p469 = pneg %p118
        %p470 = pneg %p115
        %p471 = scmp.lt.s32.totalorder %s24, 1
        %s472 = scalar_select %p471, %s24, 1
        %s473 = scalar_lea.vmem %s4, %s472
        %p474 = pneg %p144
        %p475 = pneg %p141
        %p476 = scmp.lt.s32.totalorder %s24, 1
        %s477 = scalar_select %p476, %s24, 1
        %s478 = scalar_lea.vmem %s5, %s477
        %p479 = pneg %p170
        %p480 = pneg %p167
        %p481 = scmp.lt.s32.totalorder %s24, 1
        %s482 = scalar_select %p481, %s24, 1
        %s483 = smul.addr %s482, 4
        %s484 = smul.addr %s483, 8
        %s485 = scalar_lea.vmem %s6, %s484
        %p486 = pneg %p196
        %p487 = pneg %p193
        %p488 = scmp.lt.s32.totalorder %s24, 1
        %s489 = scalar_select %p488, %s24, 1
        %s490 = scalar_lea.vmem %s7, %s489
        %p491 = pneg %p222
        %p492 = pneg %p219
        %p493 = scmp.lt.s32.totalorder %s24, 1
        %s494 = scalar_select %p493, %s24, 1
        %s495 = smul.addr %s494, 8
        %s496 = smul.addr %s495, 8
        %s497 = scalar_lea.vmem %s8, %s496
        %p498 = pneg %p248
        %p499 = pneg %p245
        %p500 = scmp.lt.s32.totalorder %s24, 1
        %s501 = scalar_select %p500, %s24, 1
        %s502 = scalar_lea.vmem %s9, %s501
        %p503 = pneg %p274
        %p504 = pneg %p271
        %p505 = scmp.lt.s32.totalorder %s24, 1
        %s506 = scalar_select %p505, %s24, 1
        %s507 = scalar_lea.vmem %s10, %s506
        %p508 = pneg %p300
        %p509 = pneg %p297
        %p510 = scmp.lt.s32.totalorder %s24, 1
        %s511 = scalar_select %p510, %s24, 1
        %s512 = scalar_lea.vmem %s11, %s511
        %p513 = pneg %p326
        %p514 = pneg %p323
        %p515 = pneg %p347
        %p516 = pneg %p344
        %p517 = scmp.lt.s32.totalorder %s24, 1
        %s518 = scalar_select %p517, %s24, 1
        %s519 = smul.addr %s518, 8
        %s520 = smul.addr %s519, 8
        %s521 = scalar_lea.vmem %s1, %s520
        %p522 = scmp.lt.s32.totalorder %s24, 1
        %s523 = scalar_select %p522, %s24, 1
        %s524 = smul.addr %s523, 8
        %s525 = smul.addr %s524, 8
        %s526 = scalar_lea.vmem %s2, %s525
        %p527 = scmp.lt.s32.totalorder %s24, 1
        %s528 = scalar_select %p527, %s24, 1
        %s529 = scalar_lea.vmem %s3, %s528
        %p530 = scmp.lt.s32.totalorder %s24, 1
        %s531 = scalar_select %p530, %s24, 1
        %s532 = scalar_lea.vmem %s4, %s531
        %p533 = scmp.lt.s32.totalorder %s24, 1
        %s534 = scalar_select %p533, %s24, 1
        %s535 = scalar_lea.vmem %s5, %s534
        %p536 = scmp.lt.s32.totalorder %s24, 1
        %s537 = scalar_select %p536, %s24, 1
        %s538 = smul.addr %s537, 4
        %s539 = smul.addr %s538, 8
        %s540 = scalar_lea.vmem %s6, %s539
        %p541 = scmp.lt.s32.totalorder %s24, 1
        %s542 = scalar_select %p541, %s24, 1
        %s543 = scalar_lea.vmem %s7, %s542
        %p544 = scmp.lt.s32.totalorder %s24, 1
        %s545 = scalar_select %p544, %s24, 1
        %s546 = smul.addr %s545, 8
        %s547 = smul.addr %s546, 8
        %s548 = scalar_lea.vmem %s8, %s547
        %p549 = scmp.lt.s32.totalorder %s24, 1
        %s550 = scalar_select %p549, %s24, 1
        %s551 = scalar_lea.vmem %s9, %s550
        %p552 = scmp.lt.s32.totalorder %s24, 1
        %s553 = scalar_select %p552, %s24, 1
        %s554 = scalar_lea.vmem %s10, %s553
        %p555 = scmp.lt.s32.totalorder %s24, 1
        %s556 = scalar_select %p555, %s24, 1
        %s557 = scalar_lea.vmem %s11, %s556
        %p558 = scmp.eq.s32.totalorder %s24, 0
        // Predicated region
        $region69: #{tpu_custom_call.1} parent=67 // pred_check
          %p559 = pneg %p558
        $region70: #{tpu_custom_call.1} parent=67 // pred_check_branch
          %561 = sbr.rel (%p559) target = $region72
        $region71: #{tpu_custom_call.1} parent=67 // pred_region
          %v562 = vld [vmem:[%s0] sm:$0xff]
          %v563 = vld [vmem:[%s0 + $0x8] sm:$0xff]
          %vm564 = vcmask 261120
          %565 = vst.msk [vmem:[#allocation2] sm:$0xff] %vm564, %v562
          %566 = vst.msk [vmem:[#allocation2 + $0x8] sm:$0xff] %vm564, %v563
        $region72: #{tpu_custom_call.1} parent=67 // pred_fallthru
          _
        %v567 = vld [vmem:[#allocation2] sm:$0xff]
        %v568 = vld [vmem:[#allocation2 + $0x8] sm:$0xff]
        %v569 = vld [vmem:[%s521] sm:$0xff]
        %v570 = vld [vmem:[%s521 + $0x8] sm:$0xff]
        %v571 = vld [vmem:[%s521 + $0x10] sm:$0xff]
        %v572 = vld [vmem:[%s521 + $0x18] sm:$0xff]
        %v573 = vld [vmem:[%s521 + $0x20] sm:$0xff]
        %v574 = vld [vmem:[%s521 + $0x28] sm:$0xff]
        %v575 = vld [vmem:[%s521 + $0x30] sm:$0xff]
        %v576 = vld [vmem:[%s521 + $0x38] sm:$0xff]
        %vm577 = vcmask 261120
        %v579 = vsel %vm577, %v567, 0
        %v582 = vsel %vm577, %v568, 0
        %584 = vmatprep.subr.mxu0 %v570
        %585 = vmatpush1.msra.mxu0 %v569
        %586 = vmatprep.subr.mxu0 %v572
        %587 = vmatpush1.msra.mxu0 %v571
        %588 = vmatprep.subr.mxu0 %v574
        %589 = vmatpush1.msra.mxu0 %v573
        %590 = vmatprep.subr.mxu0 %v576
        %591 = vmatpush1.msra.mxu0 %v575
        %592 = vmatprep.subr.mxu0 0.0
        %593 = vmatpush1.msra.mxu0 0.0
        %594 = vmatprep.subr.mxu0 0.0
        %595 = vmatpush1.msra.mxu0 0.0
        %596 = vmatprep.subr.mxu0 0.0
        %597 = vmatpush1.msra.mxu0 0.0
        %598 = vmatprep.subr.mxu0 0.0
        %599 = vmatpush1.msra.mxu0 0.0
        %600 = vmatprep.subr.mxu0 0.0
        %601 = vmatpush1.msra.mxu0 0.0
        %602 = vmatprep.subr.mxu0 0.0
        %603 = vmatpush1.msra.mxu0 0.0
        %604 = vmatprep.subr.mxu0 0.0
        %605 = vmatpush1.msra.mxu0 0.0
        %606 = vmatprep.subr.mxu0 0.0
        %607 = vmatpush1.msra.mxu0 0.0
        %608 = vmatprep.subr.mxu0 0.0
        %609 = vmatpush1.msra.mxu0 0.0
        %610 = vmatprep.subr.mxu0 0.0
        %611 = vmatpush1.msra.mxu0 0.0
        %612 = vmatprep.subr.mxu0 0.0
        %613 = vmatpush1.msra.mxu0 0.0
        %614 = vmatprep.subr.mxu0 0.0
        %615 = vmatpush1.msra.mxu0 0.0
        %616 = vmatprep.subr.mxu0 0.0
        %617 = vmatpush1.msra.mxu0 0.0
        %618 = vmatprep.subr.mxu0 0.0
        %619 = vmatpush1.msra.mxu0 0.0
        %620 = vmatprep.subr.mxu0 0.0
        %621 = vmatpush1.msra.mxu0 0.0
        %622 = vmatprep.subr.mxu0 0.0
        %623 = vmatpush1.msra.mxu0 0.0
        %624 = vmatprep.subr.mxu0 0.0
        %625 = vmatpush1.msra.mxu0 0.0
        %626 = vmatprep.subr.mxu0 0.0
        %627 = vmatpush1.msra.mxu0 0.0
        %628 = vmatprep.subr.mxu0 0.0
        %629 = vmatpush1.msra.mxu0 0.0
        %630 = vmatprep.subr.mxu0 0.0
        %631 = vmatpush1.msra.mxu0 0.0
        %632 = vmatprep.subr.mxu0 0.0
        %633 = vmatpush1.msra.mxu0 0.0
        %634 = vmatprep.subr.mxu0 0.0
        %635 = vmatpush1.msra.mxu0 0.0
        %636 = vmatprep.subr.mxu0 0.0
        %637 = vmatpush1.msra.mxu0 0.0
        %638 = vmatprep.subr.mxu0 0.0
        %639 = vmatpush1.msra.mxu0 0.0
        %640 = vmatprep.subr.mxu0 0.0
        %641 = vmatpush1.msra.mxu0 0.0
        %642 = vmatprep.subr.mxu0 0.0
        %643 = vmatpush1.msra.mxu0 0.0
        %644 = vmatprep.subr.mxu0 0.0
        %645 = vmatpush1.msra.mxu0 0.0
        %646 = vmatprep.subr.mxu0 0.0
        %647 = vmatpush1.msra.mxu0 0.0
        %648 = vmatprep.mubr.f32.mxu0 0.0
        %649 = vmatmul.mubr.f32.gmra.mrb[0].mxu0 %v579
        %v650 = vpop.f32.mrb[0].mxu0
        %v651 = vadd.f32 0.0, %v650
        %v652 = vpop.f32.mrb[0].mxu0
        %v653 = vadd.f32 0.0, %v652
        %654 = vmatprep.mubr.f32.mxu0 0.0
        %655 = vmatmul.mubr.f32.gmra.mrb[0].mxu0 %v582
        %v656 = vpop.f32.mrb[0].mxu0
        %v657 = vadd.f32 0.0, %v656
        %v658 = vpop.f32.mrb[0].mxu0
        %v659 = vadd.f32 0.0, %v658
        %660 = vdwg.mxu0
        %v661 = vmul.f32 %v651, 0.17677669
        %v662 = vmul.f32 %v657, 0.17677669
        %664 = vrot.lane.b32.xlu0 %v651, 64
        %v665 = vpop.permute.xlu0 %664
        %vm666 = vcmask 130048
        %v668 = vsel %vm666, %v661, 0
        %v670 = vsel %vm666, %v665, 0
        %672 = vmatprep.subr.mxu0 0.0
        %673 = vmatpush1.xpose.msra.mxu0 %v670
        %674 = vmatprep.subr.mxu0 0.0
        %675 = vmatpush1.xpose.msra.mxu0 0.0
        %676 = vmatprep.subr.mxu0 0.0
        %677 = vmatpush1.xpose.msra.mxu0 0.0
        %678 = vmatprep.subr.mxu0 0.0
        %679 = vmatpush1.xpose.msra.mxu0 0.0
        %680 = vmatprep.subr.mxu0 0.0
        %681 = vmatpush1.xpose.msra.mxu0 0.0
        %682 = vmatprep.subr.mxu0 0.0
        %683 = vmatpush1.xpose.msra.mxu0 0.0
        %684 = vmatprep.subr.mxu0 0.0
        %685 = vmatpush1.xpose.msra.mxu0 0.0
        %686 = vmatprep.subr.mxu0 0.0
        %687 = vmatpush1.xpose.msra.mxu0 0.0
        %688 = vmatprep.subr.mxu0 0.0
        %689 = vmatpush1.xpose.msra.mxu0 0.0
        %690 = vmatprep.subr.mxu0 0.0
        %691 = vmatpush1.xpose.msra.mxu0 0.0
        %692 = vmatprep.subr.mxu0 0.0
        %693 = vmatpush1.xpose.msra.mxu0 0.0
        %694 = vmatprep.subr.mxu0 0.0
        %695 = vmatpush1.xpose.msra.mxu0 0.0
        %696 = vmatprep.subr.mxu0 0.0
        %697 = vmatpush1.xpose.msra.mxu0 0.0
        %698 = vmatprep.subr.mxu0 0.0
        %699 = vmatpush1.xpose.msra.mxu0 0.0
        %700 = vmatprep.subr.mxu0 0.0
        %701 = vmatpush1.xpose.msra.mxu0 0.0
        %702 = vmatprep.subr.mxu0 0.0
        %703 = vmatpush1.xpose.msra.mxu0 0.0
        %704 = vmatprep.subr.mxu0 0.0
        %705 = vmatpush1.xpose.msra.mxu0 0.0
        %706 = vmatprep.subr.mxu0 0.0
        %707 = vmatpush1.xpose.msra.mxu0 0.0
        %708 = vmatprep.subr.mxu0 0.0
        %709 = vmatpush1.xpose.msra.mxu0 0.0
        %710 = vmatprep.subr.mxu0 0.0
        %711 = vmatpush1.xpose.msra.mxu0 0.0
        %712 = vmatprep.subr.mxu0 0.0
        %713 = vmatpush1.xpose.msra.mxu0 0.0
        %714 = vmatprep.subr.mxu0 0.0
        %715 = vmatpush1.xpose.msra.mxu0 0.0
        %716 = vmatprep.subr.mxu0 0.0
        %717 = vmatpush1.xpose.msra.mxu0 0.0
        %718 = vmatprep.subr.mxu0 0.0
        %719 = vmatpush1.xpose.msra.mxu0 0.0
        %720 = vmatprep.subr.mxu0 0.0
        %721 = vmatpush1.xpose.msra.mxu0 0.0
        %722 = vmatprep.subr.mxu0 0.0
        %723 = vmatpush1.xpose.msra.mxu0 0.0
        %724 = vmatprep.subr.mxu0 0.0
        %725 = vmatpush1.xpose.msra.mxu0 0.0
        %726 = vmatprep.subr.mxu0 0.0
        %727 = vmatpush1.xpose.msra.mxu0 0.0
        %728 = vmatprep.subr.mxu0 0.0
        %729 = vmatpush1.xpose.msra.mxu0 0.0
        %730 = vmatprep.subr.mxu0 0.0
        %731 = vmatpush1.xpose.msra.mxu0 0.0
        %732 = vmatprep.subr.mxu0 0.0
        %733 = vmatpush1.xpose.msra.mxu0 0.0
        %734 = vmatprep.subr.mxu0 0.0
        %735 = vmatpush1.xpose.msra.mxu0 0.0
        %736 = vmatprep.mubr.f32.mxu0 0.0
        %737 = vmatmul.mubr.f32.gmra.mrb[0].mxu0 %v668
        %v738 = vpop.f32.mrb[0].mxu0
        %v739 = vadd.f32 0.0, %v738
        %v740 = vpop.f32.mrb[0].mxu0
        %741 = vdwg.mxu0
        %743 = vrot.lane.b32.xlu0 %v657, 64
        %v744 = vpop.permute.xlu0 %743
        %v746 = vsel %vm666, %v662, 0
        %v748 = vsel %vm666, %v744, 0
        %750 = vmatprep.subr.mxu0 0.0
        %751 = vmatpush1.xpose.msra.mxu0 %v748
        %752 = vmatprep.subr.mxu0 0.0
        %753 = vmatpush1.xpose.msra.mxu0 0.0
        %754 = vmatprep.subr.mxu0 0.0
        %755 = vmatpush1.xpose.msra.mxu0 0.0
        %756 = vmatprep.subr.mxu0 0.0
        %757 = vmatpush1.xpose.msra.mxu0 0.0
        %758 = vmatprep.subr.mxu0 0.0
        %759 = vmatpush1.xpose.msra.mxu0 0.0
        %760 = vmatprep.subr.mxu0 0.0
        %761 = vmatpush1.xpose.msra.mxu0 0.0
        %762 = vmatprep.subr.mxu0 0.0
        %763 = vmatpush1.xpose.msra.mxu0 0.0
        %764 = vmatprep.subr.mxu0 0.0
        %765 = vmatpush1.xpose.msra.mxu0 0.0
        %766 = vmatprep.subr.mxu0 0.0
        %767 = vmatpush1.xpose.msra.mxu0 0.0
        %768 = vmatprep.subr.mxu0 0.0
        %769 = vmatpush1.xpose.msra.mxu0 0.0
        %770 = vmatprep.subr.mxu0 0.0
        %771 = vmatpush1.xpose.msra.mxu0 0.0
        %772 = vmatprep.subr.mxu0 0.0
        %773 = vmatpush1.xpose.msra.mxu0 0.0
        %774 = vmatprep.subr.mxu0 0.0
        %775 = vmatpush1.xpose.msra.mxu0 0.0
        %776 = vmatprep.subr.mxu0 0.0
        %777 = vmatpush1.xpose.msra.mxu0 0.0
        %778 = vmatprep.subr.mxu0 0.0
        %779 = vmatpush1.xpose.msra.mxu0 0.0
        %780 = vmatprep.subr.mxu0 0.0
        %781 = vmatpush1.xpose.msra.mxu0 0.0
        %782 = vmatprep.subr.mxu0 0.0
        %783 = vmatpush1.xpose.msra.mxu0 0.0
        %784 = vmatprep.subr.mxu0 0.0
        %785 = vmatpush1.xpose.msra.mxu0 0.0
        %786 = vmatprep.subr.mxu0 0.0
        %787 = vmatpush1.xpose.msra.mxu0 0.0
        %788 = vmatprep.subr.mxu0 0.0
        %789 = vmatpush1.xpose.msra.mxu0 0.0
        %790 = vmatprep.subr.mxu0 0.0
        %791 = vmatpush1.xpose.msra.mxu0 0.0
        %792 = vmatprep.subr.mxu0 0.0
        %793 = vmatpush1.xpose.msra.mxu0 0.0
        %794 = vmatprep.subr.mxu0 0.0
        %795 = vmatpush1.xpose.msra.mxu0 0.0
        %796 = vmatprep.subr.mxu0 0.0
        %797 = vmatpush1.xpose.msra.mxu0 0.0
        %798 = vmatprep.subr.mxu0 0.0
        %799 = vmatpush1.xpose.msra.mxu0 0.0
        %800 = vmatprep.subr.mxu0 0.0
        %801 = vmatpush1.xpose.msra.mxu0 0.0
        %802 = vmatprep.subr.mxu0 0.0
        %803 = vmatpush1.xpose.msra.mxu0 0.0
        %804 = vmatprep.subr.mxu0 0.0
        %805 = vmatpush1.xpose.msra.mxu0 0.0
        %806 = vmatprep.subr.mxu0 0.0
        %807 = vmatpush1.xpose.msra.mxu0 0.0
        %808 = vmatprep.subr.mxu0 0.0
        %809 = vmatpush1.xpose.msra.mxu0 0.0
        %810 = vmatprep.subr.mxu0 0.0
        %811 = vmatpush1.xpose.msra.mxu0 0.0
        %812 = vmatprep.subr.mxu0 0.0
        %813 = vmatpush1.xpose.msra.mxu0 0.0
        %814 = vmatprep.mubr.f32.mxu0 0.0
        %815 = vmatmul.mubr.f32.gmra.mrb[0].mxu0 %v746
        %v816 = vpop.f32.mrb[0].mxu0
        %v817 = vadd.f32 0.0, %v816
        %v818 = vpop.f32.mrb[0].mxu0
        %819 = vdwg.mxu0
        %820 = vrot.lane.b32.xlu0 %v661, 112
        %v821 = vpop.permute.xlu0 %820
        %822 = vrot.lane.b32.xlu0 %v651, 48
        %v823 = vpop.permute.xlu0 %822
        %v824 = vsel %vm666, %v821, 0
        %v826 = vsel %vm666, %v823, 0
        %828 = vmatprep.subr.mxu0 0.0
        %829 = vmatpush1.xpose.msra.mxu0 %v826
        %830 = vmatprep.subr.mxu0 0.0
        %831 = vmatpush1.xpose.msra.mxu0 0.0
        %832 = vmatprep.subr.mxu0 0.0
        %833 = vmatpush1.xpose.msra.mxu0 0.0
        %834 = vmatprep.subr.mxu0 0.0
        %835 = vmatpush1.xpose.msra.mxu0 0.0
        %836 = vmatprep.subr.mxu0 0.0
        %837 = vmatpush1.xpose.msra.mxu0 0.0
        %838 = vmatprep.subr.mxu0 0.0
        %839 = vmatpush1.xpose.msra.mxu0 0.0
        %840 = vmatprep.subr.mxu0 0.0
        %841 = vmatpush1.xpose.msra.mxu0 0.0
        %842 = vmatprep.subr.mxu0 0.0
        %843 = vmatpush1.xpose.msra.mxu0 0.0
        %844 = vmatprep.subr.mxu0 0.0
        %845 = vmatpush1.xpose.msra.mxu0 0.0
        %846 = vmatprep.subr.mxu0 0.0
        %847 = vmatpush1.xpose.msra.mxu0 0.0
        %848 = vmatprep.subr.mxu0 0.0
        %849 = vmatpush1.xpose.msra.mxu0 0.0
        %850 = vmatprep.subr.mxu0 0.0
        %851 = vmatpush1.xpose.msra.mxu0 0.0
        %852 = vmatprep.subr.mxu0 0.0
        %853 = vmatpush1.xpose.msra.mxu0 0.0
        %854 = vmatprep.subr.mxu0 0.0
        %855 = vmatpush1.xpose.msra.mxu0 0.0
        %856 = vmatprep.subr.mxu0 0.0
        %857 = vmatpush1.xpose.msra.mxu0 0.0
        %858 = vmatprep.subr.mxu0 0.0
        %859 = vmatpush1.xpose.msra.mxu0 0.0
        %860 = vmatprep.subr.mxu0 0.0
        %861 = vmatpush1.xpose.msra.mxu0 0.0
        %862 = vmatprep.subr.mxu0 0.0
        %863 = vmatpush1.xpose.msra.mxu0 0.0
        %864 = vmatprep.subr.mxu0 0.0
        %865 = vmatpush1.xpose.msra.mxu0 0.0
        %866 = vmatprep.subr.mxu0 0.0
        %867 = vmatpush1.xpose.msra.mxu0 0.0
        %868 = vmatprep.subr.mxu0 0.0
        %869 = vmatpush1.xpose.msra.mxu0 0.0
        %870 = vmatprep.subr.mxu0 0.0
        %871 = vmatpush1.xpose.msra.mxu0 0.0
        %872 = vmatprep.subr.mxu0 0.0
        %873 = vmatpush1.xpose.msra.mxu0 0.0
        %874 = vmatprep.subr.mxu0 0.0
        %875 = vmatpush1.xpose.msra.mxu0 0.0
        %876 = vmatprep.subr.mxu0 0.0
        %877 = vmatpush1.xpose.msra.mxu0 0.0
        %878 = vmatprep.subr.mxu0 0.0
        %879 = vmatpush1.xpose.msra.mxu0 0.0
        %880 = vmatprep.subr.mxu0 0.0
        %881 = vmatpush1.xpose.msra.mxu0 0.0
        %882 = vmatprep.subr.mxu0 0.0
        %883 = vmatpush1.xpose.msra.mxu0 0.0
        %884 = vmatprep.subr.mxu0 0.0
        %885 = vmatpush1.xpose.msra.mxu0 0.0
        %886 = vmatprep.subr.mxu0 0.0
        %887 = vmatpush1.xpose.msra.mxu0 0.0
        %888 = vmatprep.subr.mxu0 0.0
        %889 = vmatpush1.xpose.msra.mxu0 0.0
        %890 = vmatprep.subr.mxu0 0.0
        %891 = vmatpush1.xpose.msra.mxu0 0.0
        %892 = vmatprep.mubr.f32.mxu0 0.0
        %893 = vmatmul.mubr.f32.gmra.mrb[0].mxu0 %v824
        %v894 = vpop.f32.mrb[0].mxu0
        %v895 = vadd.f32 0.0, %v894
        %v896 = vpop.f32.mrb[0].mxu0
        %897 = vdwg.mxu0
        %898 = vrot.lane.b32.xlu0 %v662, 112
        %v899 = vpop.permute.xlu0 %898
        %900 = vrot.lane.b32.xlu0 %v657, 48
        %v901 = vpop.permute.xlu0 %900
        %v902 = vsel %vm666, %v899, 0
        %v904 = vsel %vm666, %v901, 0
        %906 = vmatprep.subr.mxu0 0.0
        %907 = vmatpush1.xpose.msra.mxu0 %v904
        %908 = vmatprep.subr.mxu0 0.0
        %909 = vmatpush1.xpose.msra.mxu0 0.0
        %910 = vmatprep.subr.mxu0 0.0
        %911 = vmatpush1.xpose.msra.mxu0 0.0
        %912 = vmatprep.subr.mxu0 0.0
        %913 = vmatpush1.xpose.msra.mxu0 0.0
        %914 = vmatprep.subr.mxu0 0.0
        %915 = vmatpush1.xpose.msra.mxu0 0.0
        %916 = vmatprep.subr.mxu0 0.0
        %917 = vmatpush1.xpose.msra.mxu0 0.0
        %918 = vmatprep.subr.mxu0 0.0
        %919 = vmatpush1.xpose.msra.mxu0 0.0
        %920 = vmatprep.subr.mxu0 0.0
        %921 = vmatpush1.xpose.msra.mxu0 0.0
        %922 = vmatprep.subr.mxu0 0.0
        %923 = vmatpush1.xpose.msra.mxu0 0.0
        %924 = vmatprep.subr.mxu0 0.0
        %925 = vmatpush1.xpose.msra.mxu0 0.0
        %926 = vmatprep.subr.mxu0 0.0
        %927 = vmatpush1.xpose.msra.mxu0 0.0
        %928 = vmatprep.subr.mxu0 0.0
        %929 = vmatpush1.xpose.msra.mxu0 0.0
        %930 = vmatprep.subr.mxu0 0.0
        %931 = vmatpush1.xpose.msra.mxu0 0.0
        %932 = vmatprep.subr.mxu0 0.0
        %933 = vmatpush1.xpose.msra.mxu0 0.0
        %934 = vmatprep.subr.mxu0 0.0
        %935 = vmatpush1.xpose.msra.mxu0 0.0
        %936 = vmatprep.subr.mxu0 0.0
        %937 = vmatpush1.xpose.msra.mxu0 0.0
        %938 = vmatprep.subr.mxu0 0.0
        %939 = vmatpush1.xpose.msra.mxu0 0.0
        %940 = vmatprep.subr.mxu0 0.0
        %941 = vmatpush1.xpose.msra.mxu0 0.0
        %942 = vmatprep.subr.mxu0 0.0
        %943 = vmatpush1.xpose.msra.mxu0 0.0
        %944 = vmatprep.subr.mxu0 0.0
        %945 = vmatpush1.xpose.msra.mxu0 0.0
        %946 = vmatprep.subr.mxu0 0.0
        %947 = vmatpush1.xpose.msra.mxu0 0.0
        %948 = vmatprep.subr.mxu0 0.0
        %949 = vmatpush1.xpose.msra.mxu0 0.0
        %950 = vmatprep.subr.mxu0 0.0
        %951 = vmatpush1.xpose.msra.mxu0 0.0
        %952 = vmatprep.subr.mxu0 0.0
        %953 = vmatpush1.xpose.msra.mxu0 0.0
        %954 = vmatprep.subr.mxu0 0.0
        %955 = vmatpush1.xpose.msra.mxu0 0.0
        %956 = vmatprep.subr.mxu0 0.0
        %957 = vmatpush1.xpose.msra.mxu0 0.0
        %958 = vmatprep.subr.mxu0 0.0
        %959 = vmatpush1.xpose.msra.mxu0 0.0
        %960 = vmatprep.subr.mxu0 0.0
        %961 = vmatpush1.xpose.msra.mxu0 0.0
        %962 = vmatprep.subr.mxu0 0.0
        %963 = vmatpush1.xpose.msra.mxu0 0.0
        %964 = vmatprep.subr.mxu0 0.0
        %965 = vmatpush1.xpose.msra.mxu0 0.0
        %966 = vmatprep.subr.mxu0 0.0
        %967 = vmatpush1.xpose.msra.mxu0 0.0
        %968 = vmatprep.subr.mxu0 0.0
        %969 = vmatpush1.xpose.msra.mxu0 0.0
        %970 = vmatprep.mubr.f32.mxu0 0.0
        %971 = vmatmul.mubr.f32.gmra.mrb[0].mxu0 %v902
        %v972 = vpop.f32.mrb[0].mxu0
        %v973 = vadd.f32 0.0, %v972
        %v974 = vpop.f32.mrb[0].mxu0
        %975 = vdwg.mxu0
        %976 = vrot.lane.b32.xlu0 %v661, 96
        %v977 = vpop.permute.xlu0 %976
        %978 = vrot.lane.b32.xlu0 %v651, 32
        %v979 = vpop.permute.xlu0 %978
        %v980 = vsel %vm666, %v977, 0
        %v982 = vsel %vm666, %v979, 0
        %984 = vmatprep.subr.mxu0 0.0
        %985 = vmatpush1.xpose.msra.mxu0 %v982
        %986 = vmatprep.subr.mxu0 0.0
        %987 = vmatpush1.xpose.msra.mxu0 0.0
        %988 = vmatprep.subr.mxu0 0.0
        %989 = vmatpush1.xpose.msra.mxu0 0.0
        %990 = vmatprep.subr.mxu0 0.0
        %991 = vmatpush1.xpose.msra.mxu0 0.0
        %992 = vmatprep.subr.mxu0 0.0
        %993 = vmatpush1.xpose.msra.mxu0 0.0
        %994 = vmatprep.subr.mxu0 0.0
        %995 = vmatpush1.xpose.msra.mxu0 0.0
        %996 = vmatprep.subr.mxu0 0.0
        %997 = vmatpush1.xpose.msra.mxu0 0.0
        %998 = vmatprep.subr.mxu0 0.0
        %999 = vmatpush1.xpose.msra.mxu0 0.0
        %1000 = vmatprep.subr.mxu0 0.0
        %1001 = vmatpush1.xpose.msra.mxu0 0.0
        %1002 = vmatprep.subr.mxu0 0.0
        %1003 = vmatpush1.xpose.msra.mxu0 0.0
        %1004 = vmatprep.subr.mxu0 0.0
        %1005 = vmatpush1.xpose.msra.mxu0 0.0
        %1006 = vmatprep.subr.mxu0 0.0
        %1007 = vmatpush1.xpose.msra.mxu0 0.0
        %1008 = vmatprep.subr.mxu0 0.0
        %1009 = vmatpush1.xpose.msra.mxu0 0.0
        %1010 = vmatprep.subr.mxu0 0.0
        %1011 = vmatpush1.xpose.msra.mxu0 0.0
        %1012 = vmatprep.subr.mxu0 0.0
        %1013 = vmatpush1.xpose.msra.mxu0 0.0
        %1014 = vmatprep.subr.mxu0 0.0
        %1015 = vmatpush1.xpose.msra.mxu0 0.0
        %1016 = vmatprep.subr.mxu0 0.0
        %1017 = vmatpush1.xpose.msra.mxu0 0.0
        %1018 = vmatprep.subr.mxu0 0.0
        %1019 = vmatpush1.xpose.msra.mxu0 0.0
        %1020 = vmatprep.subr.mxu0 0.0
        %1021 = vmatpush1.xpose.msra.mxu0 0.0
        %1022 = vmatprep.subr.mxu0 0.0
        %1023 = vmatpush1.xpose.msra.mxu0 0.0
        %1024 = vmatprep.subr.mxu0 0.0
        %1025 = vmatpush1.xpose.msra.mxu0 0.0
        %1026 = vmatprep.subr.mxu0 0.0
        %1027 = vmatpush1.xpose.msra.mxu0 0.0
        %1028 = vmatprep.subr.mxu0 0.0
        %1029 = vmatpush1.xpose.msra.mxu0 0.0
        %1030 = vmatprep.subr.mxu0 0.0
        %1031 = vmatpush1.xpose.msra.mxu0 0.0
        %1032 = vmatprep.subr.mxu0 0.0
        %1033 = vmatpush1.xpose.msra.mxu0 0.0
        %1034 = vmatprep.subr.mxu0 0.0
        %1035 = vmatpush1.xpose.msra.mxu0 0.0
        %1036 = vmatprep.subr.mxu0 0.0
        %1037 = vmatpush1.xpose.msra.mxu0 0.0
        %1038 = vmatprep.subr.mxu0 0.0
        %1039 = vmatpush1.xpose.msra.mxu0 0.0
        %1040 = vmatprep.subr.mxu0 0.0
        %1041 = vmatpush1.xpose.msra.mxu0 0.0
        %1042 = vmatprep.subr.mxu0 0.0
        %1043 = vmatpush1.xpose.msra.mxu0 0.0
        %1044 = vmatprep.subr.mxu0 0.0
        %1045 = vmatpush1.xpose.msra.mxu0 0.0
        %1046 = vmatprep.subr.mxu0 0.0
        %1047 = vmatpush1.xpose.msra.mxu0 0.0
        %1048 = vmatprep.mubr.f32.mxu0 0.0
        %1049 = vmatmul.mubr.f32.gmra.mrb[0].mxu0 %v980
        %v1050 = vpop.f32.mrb[0].mxu0
        %v1051 = vadd.f32 0.0, %v1050
        %v1052 = vpop.f32.mrb[0].mxu0
        %1053 = vdwg.mxu0
        %1054 = vrot.lane.b32.xlu0 %v662, 96
        %v1055 = vpop.permute.xlu0 %1054
        %1056 = vrot.lane.b32.xlu0 %v657, 32
        %v1057 = vpop.permute.xlu0 %1056
        %v1058 = vsel %vm666, %v1055, 0
        %v1060 = vsel %vm666, %v1057, 0
        %1062 = vmatprep.subr.mxu0 0.0
        %1063 = vmatpush1.xpose.msra.mxu0 %v1060
        %1064 = vmatprep.subr.mxu0 0.0
        %1065 = vmatpush1.xpose.msra.mxu0 0.0
        %1066 = vmatprep.subr.mxu0 0.0
        %1067 = vmatpush1.xpose.msra.mxu0 0.0
        %1068 = vmatprep.subr.mxu0 0.0
        %1069 = vmatpush1.xpose.msra.mxu0 0.0
        %1070 = vmatprep.subr.mxu0 0.0
        %1071 = vmatpush1.xpose.msra.mxu0 0.0
        %1072 = vmatprep.subr.mxu0 0.0
        %1073 = vmatpush1.xpose.msra.mxu0 0.0
        %1074 = vmatprep.subr.mxu0 0.0
        %1075 = vmatpush1.xpose.msra.mxu0 0.0
        %1076 = vmatprep.subr.mxu0 0.0
        %1077 = vmatpush1.xpose.msra.mxu0 0.0
        %1078 = vmatprep.subr.mxu0 0.0
        %1079 = vmatpush1.xpose.msra.mxu0 0.0
        %1080 = vmatprep.subr.mxu0 0.0
        %1081 = vmatpush1.xpose.msra.mxu0 0.0
        %1082 = vmatprep.subr.mxu0 0.0
        %1083 = vmatpush1.xpose.msra.mxu0 0.0
        %1084 = vmatprep.subr.mxu0 0.0
        %1085 = vmatpush1.xpose.msra.mxu0 0.0
        %1086 = vmatprep.subr.mxu0 0.0
        %1087 = vmatpush1.xpose.msra.mxu0 0.0
        %1088 = vmatprep.subr.mxu0 0.0
        %1089 = vmatpush1.xpose.msra.mxu0 0.0
        %1090 = vmatprep.subr.mxu0 0.0
        %1091 = vmatpush1.xpose.msra.mxu0 0.0
        %1092 = vmatprep.subr.mxu0 0.0
        %1093 = vmatpush1.xpose.msra.mxu0 0.0
        %1094 = vmatprep.subr.mxu0 0.0
        %1095 = vmatpush1.xpose.msra.mxu0 0.0
        %1096 = vmatprep.subr.mxu0 0.0
        %1097 = vmatpush1.xpose.msra.mxu0 0.0
        %1098 = vmatprep.subr.mxu0 0.0
        %1099 = vmatpush1.xpose.msra.mxu0 0.0
        %1100 = vmatprep.subr.mxu0 0.0
        %1101 = vmatpush1.xpose.msra.mxu0 0.0
        %1102 = vmatprep.subr.mxu0 0.0
        %1103 = vmatpush1.xpose.msra.mxu0 0.0
        %1104 = vmatprep.subr.mxu0 0.0
        %1105 = vmatpush1.xpose.msra.mxu0 0.0
        %1106 = vmatprep.subr.mxu0 0.0
        %1107 = vmatpush1.xpose.msra.mxu0 0.0
        %1108 = vmatprep.subr.mxu0 0.0
        %1109 = vmatpush1.xpose.msra.mxu0 0.0
        %1110 = vmatprep.subr.mxu0 0.0
        %1111 = vmatpush1.xpose.msra.mxu0 0.0
        %1112 = vmatprep.subr.mxu0 0.0
        %1113 = vmatpush1.xpose.msra.mxu0 0.0
        %1114 = vmatprep.subr.mxu0 0.0
        %1115 = vmatpush1.xpose.msra.mxu0 0.0
        %1116 = vmatprep.subr.mxu0 0.0
        %1117 = vmatpush1.xpose.msra.mxu0 0.0
        %1118 = vmatprep.subr.mxu0 0.0
        %1119 = vmatpush1.xpose.msra.mxu0 0.0
        %1120 = vmatprep.subr.mxu0 0.0
        %1121 = vmatpush1.xpose.msra.mxu0 0.0
        %1122 = vmatprep.subr.mxu0 0.0
        %1123 = vmatpush1.xpose.msra.mxu0 0.0
        %1124 = vmatprep.subr.mxu0 0.0
        %1125 = vmatpush1.xpose.msra.mxu0 0.0
        %1126 = vmatprep.mubr.f32.mxu0 0.0
        %1127 = vmatmul.mubr.f32.gmra.mrb[0].mxu0 %v1058
        %v1128 = vpop.f32.mrb[0].mxu0
        %v1129 = vadd.f32 0.0, %v1128
        %v1130 = vpop.f32.mrb[0].mxu0
        %1131 = vdwg.mxu0
        %1132 = vrot.lane.b32.xlu0 %v661, 80
        %v1133 = vpop.permute.xlu0 %1132
        %1134 = vrot.lane.b32.xlu0 %v651, 16
        %v1135 = vpop.permute.xlu0 %1134
        %v1136 = vsel %vm666, %v1133, 0
        %v1138 = vsel %vm666, %v1135, 0
        %1140 = vmatprep.subr.mxu0 0.0
        %1141 = vmatpush1.xpose.msra.mxu0 %v1138
        %1142 = vmatprep.subr.mxu0 0.0
        %1143 = vmatpush1.xpose.msra.mxu0 0.0
        %1144 = vmatprep.subr.mxu0 0.0
        %1145 = vmatpush1.xpose.msra.mxu0 0.0
        %1146 = vmatprep.subr.mxu0 0.0
        %1147 = vmatpush1.xpose.msra.mxu0 0.0
        %1148 = vmatprep.subr.mxu0 0.0
        %1149 = vmatpush1.xpose.msra.mxu0 0.0
        %1150 = vmatprep.subr.mxu0 0.0
        %1151 = vmatpush1.xpose.msra.mxu0 0.0
        %1152 = vmatprep.subr.mxu0 0.0
        %1153 = vmatpush1.xpose.msra.mxu0 0.0
        %1154 = vmatprep.subr.mxu0 0.0
        %1155 = vmatpush1.xpose.msra.mxu0 0.0
        %1156 = vmatprep.subr.mxu0 0.0
        %1157 = vmatpush1.xpose.msra.mxu0 0.0
        %1158 = vmatprep.subr.mxu0 0.0
        %1159 = vmatpush1.xpose.msra.mxu0 0.0
        %1160 = vmatprep.subr.mxu0 0.0
        %1161 = vmatpush1.xpose.msra.mxu0 0.0
        %1162 = vmatprep.subr.mxu0 0.0
        %1163 = vmatpush1.xpose.msra.mxu0 0.0
        %1164 = vmatprep.subr.mxu0 0.0
        %1165 = vmatpush1.xpose.msra.mxu0 0.0
        %1166 = vmatprep.subr.mxu0 0.0
        %1167 = vmatpush1.xpose.msra.mxu0 0.0
        %1168 = vmatprep.subr.mxu0 0.0
        %1169 = vmatpush1.xpose.msra.mxu0 0.0
        %1170 = vmatprep.subr.mxu0 0.0
        %1171 = vmatpush1.xpose.msra.mxu0 0.0
        %1172 = vmatprep.subr.mxu0 0.0
        %1173 = vmatpush1.xpose.msra.mxu0 0.0
        %1174 = vmatprep.subr.mxu0 0.0
        %1175 = vmatpush1.xpose.msra.mxu0 0.0
        %1176 = vmatprep.subr.mxu0 0.0
        %1177 = vmatpush1.xpose.msra.mxu0 0.0
        %1178 = vmatprep.subr.mxu0 0.0
        %1179 = vmatpush1.xpose.msra.mxu0 0.0
        %1180 = vmatprep.subr.mxu0 0.0
        %1181 = vmatpush1.xpose.msra.mxu0 0.0
        %1182 = vmatprep.subr.mxu0 0.0
        %1183 = vmatpush1.xpose.msra.mxu0 0.0
        %1184 = vmatprep.subr.mxu0 0.0
        %1185 = vmatpush1.xpose.msra.mxu0 0.0
        %1186 = vmatprep.subr.mxu0 0.0
        %1187 = vmatpush1.xpose.msra.mxu0 0.0
        %1188 = vmatprep.subr.mxu0 0.0
        %1189 = vmatpush1.xpose.msra.mxu0 0.0
        %1190 = vmatprep.subr.mxu0 0.0
        %1191 = vmatpush1.xpose.msra.mxu0 0.0
        %1192 = vmatprep.subr.mxu0 0.0
        %1193 = vmatpush1.xpose.msra.mxu0 0.0
        %1194 = vmatprep.subr.mxu0 0.0
        %1195 = vmatpush1.xpose.msra.mxu0 0.0
        %1196 = vmatprep.subr.mxu0 0.0
        %1197 = vmatpush1.xpose.msra.mxu0 0.0
        %1198 = vmatprep.subr.mxu0 0.0
        %1199 = vmatpush1.xpose.msra.mxu0 0.0
        %1200 = vmatprep.subr.mxu0 0.0
        %1201 = vmatpush1.xpose.msra.mxu0 0.0
        %1202 = vmatprep.subr.mxu0 0.0
        %1203 = vmatpush1.xpose.msra.mxu0 0.0
        %1204 = vmatprep.mubr.f32.mxu0 0.0
        %1205 = vmatmul.mubr.f32.gmra.mrb[0].mxu0 %v1136
        %v1206 = vpop.f32.mrb[0].mxu0
        %v1207 = vadd.f32 0.0, %v1206
        %v1208 = vpop.f32.mrb[0].mxu0
        %1209 = vdwg.mxu0
        %1210 = vrot.lane.b32.xlu0 %v662, 80
        %v1211 = vpop.permute.xlu0 %1210
        %1212 = vrot.lane.b32.xlu0 %v657, 16
        %v1213 = vpop.permute.xlu0 %1212
        %v1214 = vsel %vm666, %v1211, 0
        %v1216 = vsel %vm666, %v1213, 0
        %1218 = vmatprep.subr.mxu0 0.0
        %1219 = vmatpush1.xpose.msra.mxu0 %v1216
        %1220 = vmatprep.subr.mxu0 0.0
        %1221 = vmatpush1.xpose.msra.mxu0 0.0
        %1222 = vmatprep.subr.mxu0 0.0
        %1223 = vmatpush1.xpose.msra.mxu0 0.0
        %1224 = vmatprep.subr.mxu0 0.0
        %1225 = vmatpush1.xpose.msra.mxu0 0.0
        %1226 = vmatprep.subr.mxu0 0.0
        %1227 = vmatpush1.xpose.msra.mxu0 0.0
        %1228 = vmatprep.subr.mxu0 0.0
        %1229 = vmatpush1.xpose.msra.mxu0 0.0
        %1230 = vmatprep.subr.mxu0 0.0
        %1231 = vmatpush1.xpose.msra.mxu0 0.0
        %1232 = vmatprep.subr.mxu0 0.0
        %1233 = vmatpush1.xpose.msra.mxu0 0.0
        %1234 = vmatprep.subr.mxu0 0.0
        %1235 = vmatpush1.xpose.msra.mxu0 0.0
        %1236 = vmatprep.subr.mxu0 0.0
        %1237 = vmatpush1.xpose.msra.mxu0 0.0
        %1238 = vmatprep.subr.mxu0 0.0
        %1239 = vmatpush1.xpose.msra.mxu0 0.0
        %1240 = vmatprep.subr.mxu0 0.0
        %1241 = vmatpush1.xpose.msra.mxu0 0.0
        %1242 = vmatprep.subr.mxu0 0.0
        %1243 = vmatpush1.xpose.msra.mxu0 0.0
        %1244 = vmatprep.subr.mxu0 0.0
        %1245 = vmatpush1.xpose.msra.mxu0 0.0
        %1246 = vmatprep.subr.mxu0 0.0
        %1247 = vmatpush1.xpose.msra.mxu0 0.0
        %1248 = vmatprep.subr.mxu0 0.0
        %1249 = vmatpush1.xpose.msra.mxu0 0.0
        %1250 = vmatprep.subr.mxu0 0.0
        %1251 = vmatpush1.xpose.msra.mxu0 0.0
        %1252 = vmatprep.subr.mxu0 0.0
        %1253 = vmatpush1.xpose.msra.mxu0 0.0
        %1254 = vmatprep.subr.mxu0 0.0
        %1255 = vmatpush1.xpose.msra.mxu0 0.0
        %1256 = vmatprep.subr.mxu0 0.0
        %1257 = vmatpush1.xpose.msra.mxu0 0.0
        %1258 = vmatprep.subr.mxu0 0.0
        %1259 = vmatpush1.xpose.msra.mxu0 0.0
        %1260 = vmatprep.subr.mxu0 0.0
        %1261 = vmatpush1.xpose.msra.mxu0 0.0
        %1262 = vmatprep.subr.mxu0 0.0
        %1263 = vmatpush1.xpose.msra.mxu0 0.0
        %1264 = vmatprep.subr.mxu0 0.0
        %1265 = vmatpush1.xpose.msra.mxu0 0.0
        %1266 = vmatprep.subr.mxu0 0.0
        %1267 = vmatpush1.xpose.msra.mxu0 0.0
        %1268 = vmatprep.subr.mxu0 0.0
        %1269 = vmatpush1.xpose.msra.mxu0 0.0
        %1270 = vmatprep.subr.mxu0 0.0
        %1271 = vmatpush1.xpose.msra.mxu0 0.0
        %1272 = vmatprep.subr.mxu0 0.0
        %1273 = vmatpush1.xpose.msra.mxu0 0.0
        %1274 = vmatprep.subr.mxu0 0.0
        %1275 = vmatpush1.xpose.msra.mxu0 0.0
        %1276 = vmatprep.subr.mxu0 0.0
        %1277 = vmatpush1.xpose.msra.mxu0 0.0
        %1278 = vmatprep.subr.mxu0 0.0
        %1279 = vmatpush1.xpose.msra.mxu0 0.0
        %1280 = vmatprep.subr.mxu0 0.0
        %1281 = vmatpush1.xpose.msra.mxu0 0.0
        %1282 = vmatprep.mubr.f32.mxu0 0.0
        %1283 = vmatmul.mubr.f32.gmra.mrb[0].mxu0 %v1214
        %v1284 = vpop.f32.mrb[0].mxu0
        %v1285 = vadd.f32 0.0, %v1284
        %v1286 = vpop.f32.mrb[0].mxu0
        %1287 = vdwg.mxu0
        %vm1288 = vcmask 64512
        %v1289 = vsel %vm1288, %v739, -inf
        %v1290 = vsel %vm1288, %v817, -inf
        %v1291 = vsel %vm1288, %v895, -inf
        %v1292 = vsel %vm1288, %v973, -inf
        %v1293 = vsel %vm1288, %v1051, -inf
        %v1294 = vmax.f32 %v1289, %v1293
        %v1295 = vsel %vm1288, %v1129, -inf
        %v1296 = vmax.f32 %v1290, %v1295
        %v1297 = vsel %vm1288, %v1207, -inf
        %v1298 = vmax.f32 %v1291, %v1297
        %v1299 = vsel %vm1288, %v1285, -inf
        %v1300 = vmax.f32 %v1292, %v1299
        %v1301 = vmax.f32 %v1294, %v1296
        %v1302 = vmax.f32 %v1298, %v1300
        %v1303 = vmax.f32 %v1301, %v1302
        %v1304 = vsub.f32 %v739, %v1303
        %v1305 = vsub.f32 %v817, %v1303
        %v1306 = vsub.f32 %v895, %v1303
        %v1307 = vsub.f32 %v973, %v1303
        %v1308 = vsub.f32 %v1051, %v1303
        %v1309 = vsub.f32 %v1129, %v1303
        %v1310 = vsub.f32 %v1207, %v1303
        %v1311 = vsub.f32 %v1285, %v1303
        %v1312 = vmul.f32 %v1304, 1.442695
        %v1313 = vpow.pop %v1312
        %v1314 = vmul.f32 %v1305, 1.442695
        %v1315 = vpow.pop %v1314
        %v1316 = vmul.f32 %v1306, 1.442695
        %v1317 = vpow.pop %v1316
        %v1318 = vmul.f32 %v1307, 1.442695
        %v1319 = vpow.pop %v1318
        %v1320 = vmul.f32 %v1308, 1.442695
        %v1321 = vpow.pop %v1320
        %v1322 = vmul.f32 %v1309, 1.442695
        %v1323 = vpow.pop %v1322
        %v1324 = vmul.f32 %v1310, 1.442695
        %v1325 = vpow.pop %v1324
        %v1326 = vmul.f32 %v1311, 1.442695
        %v1327 = vpow.pop %v1326
        %v1328 = vsel %vm1288, %v1313, 0.0
        %v1329 = vsel %vm1288, %v1315, 0.0
        %v1330 = vadd.f32 %v1328, %v1329
        %v1331 = vsel %vm1288, %v1317, 0.0
        %v1332 = vadd.f32 %v1330, %v1331
        %v1333 = vsel %vm1288, %v1319, 0.0
        %v1334 = vadd.f32 %v1332, %v1333
        %v1335 = vsel %vm1288, %v1321, 0.0
        %v1336 = vadd.f32 %v1334, %v1335
        %v1337 = vsel %vm1288, %v1323, 0.0
        %v1338 = vadd.f32 %v1336, %v1337
        %v1339 = vsel %vm1288, %v1325, 0.0
        %v1340 = vadd.f32 %v1338, %v1339
        %v1341 = vsel %vm1288, %v1327, 0.0
        %v1342 = vadd.f32 %v1340, %v1341
        %v1343 = vrcp.pop %v1342
        %v1344 = vmul.f32 %v1313, %v1343
        %v1345 = vmul.f32 %v1315, %v1343
        %v1346 = vmul.f32 %v1317, %v1343
        %v1347 = vmul.f32 %v1319, %v1343
        %v1348 = vmul.f32 %v1321, %v1343
        %v1349 = vmul.f32 %v1323, %v1343
        %v1350 = vmul.f32 %v1325, %v1343
        %v1351 = vmul.f32 %v1327, %v1343
        %v1353 = vsel %vm1288, %v1344, 0
        %1355 = vmatprep.subr.mxu0 0.0
        %1356 = vmatpush1.msra.mxu0 %v653
        %1357 = vmatprep.subr.mxu0 0.0
        %1358 = vmatpush1.msra.mxu0 0.0
        %1359 = vmatprep.subr.mxu0 0.0
        %1360 = vmatpush1.msra.mxu0 0.0
        %1361 = vmatprep.subr.mxu0 0.0
        %1362 = vmatpush1.msra.mxu0 0.0
        %1363 = vmatprep.subr.mxu0 0.0
        %1364 = vmatpush1.msra.mxu0 0.0
        %1365 = vmatprep.subr.mxu0 0.0
        %1366 = vmatpush1.msra.mxu0 0.0
        %1367 = vmatprep.subr.mxu0 0.0
        %1368 = vmatpush1.msra.mxu0 0.0
        %1369 = vmatprep.subr.mxu0 0.0
        %1370 = vmatpush1.msra.mxu0 0.0
        %1371 = vmatprep.subr.mxu0 0.0
        %1372 = vmatpush1.msra.mxu0 0.0
        %1373 = vmatprep.subr.mxu0 0.0
        %1374 = vmatpush1.msra.mxu0 0.0
        %1375 = vmatprep.subr.mxu0 0.0
        %1376 = vmatpush1.msra.mxu0 0.0
        %1377 = vmatprep.subr.mxu0 0.0
        %1378 = vmatpush1.msra.mxu0 0.0
        %1379 = vmatprep.subr.mxu0 0.0
        %1380 = vmatpush1.msra.mxu0 0.0
        %1381 = vmatprep.subr.mxu0 0.0
        %1382 = vmatpush1.msra.mxu0 0.0
        %1383 = vmatprep.subr.mxu0 0.0
        %1384 = vmatpush1.msra.mxu0 0.0
        %1385 = vmatprep.subr.mxu0 0.0
        %1386 = vmatpush1.msra.mxu0 0.0
        %1387 = vmatprep.subr.mxu0 0.0
        %1388 = vmatpush1.msra.mxu0 0.0
        %1389 = vmatprep.subr.mxu0 0.0
        %1390 = vmatpush1.msra.mxu0 0.0
        %1391 = vmatprep.subr.mxu0 0.0
        %1392 = vmatpush1.msra.mxu0 0.0
        %1393 = vmatprep.subr.mxu0 0.0
        %1394 = vmatpush1.msra.mxu0 0.0
        %1395 = vmatprep.subr.mxu0 0.0
        %1396 = vmatpush1.msra.mxu0 0.0
        %1397 = vmatprep.subr.mxu0 0.0
        %1398 = vmatpush1.msra.mxu0 0.0
        %1399 = vmatprep.subr.mxu0 0.0
        %1400 = vmatpush1.msra.mxu0 0.0
        %1401 = vmatprep.subr.mxu0 0.0
        %1402 = vmatpush1.msra.mxu0 0.0
        %1403 = vmatprep.subr.mxu0 0.0
        %1404 = vmatpush1.msra.mxu0 0.0
        %1405 = vmatprep.subr.mxu0 0.0
        %1406 = vmatpush1.msra.mxu0 0.0
        %1407 = vmatprep.subr.mxu0 0.0
        %1408 = vmatpush1.msra.mxu0 0.0
        %1409 = vmatprep.subr.mxu0 0.0
        %1410 = vmatpush1.msra.mxu0 0.0
        %1411 = vmatprep.subr.mxu0 0.0
        %1412 = vmatpush1.msra.mxu0 0.0
        %1413 = vmatprep.subr.mxu0 0.0
        %1414 = vmatpush1.msra.mxu0 0.0
        %1415 = vmatprep.subr.mxu0 0.0
        %1416 = vmatpush1.msra.mxu0 0.0
        %1417 = vmatprep.subr.mxu0 0.0
        %1418 = vmatpush1.msra.mxu0 0.0
        %1419 = vmatprep.mubr.f32.mxu0 0.0
        %1420 = vmatmul.mubr.f32.gmra.mrb[0].mxu0 %v1353
        %v1421 = vpop.f32.mrb[0].mxu0
        %v1422 = vadd.f32 0.0, %v1421
        %v1423 = vpop.f32.mrb[0].mxu0
        %1424 = vdwg.mxu0
        %v1426 = vsel %vm1288, %v1345, 0
        %1428 = vmatprep.subr.mxu0 0.0
        %1429 = vmatpush1.msra.mxu0 %v659
        %1430 = vmatprep.subr.mxu0 0.0
        %1431 = vmatpush1.msra.mxu0 0.0
        %1432 = vmatprep.subr.mxu0 0.0
        %1433 = vmatpush1.msra.mxu0 0.0
        %1434 = vmatprep.subr.mxu0 0.0
        %1435 = vmatpush1.msra.mxu0 0.0
        %1436 = vmatprep.subr.mxu0 0.0
        %1437 = vmatpush1.msra.mxu0 0.0
        %1438 = vmatprep.subr.mxu0 0.0
        %1439 = vmatpush1.msra.mxu0 0.0
        %1440 = vmatprep.subr.mxu0 0.0
        %1441 = vmatpush1.msra.mxu0 0.0
        %1442 = vmatprep.subr.mxu0 0.0
        %1443 = vmatpush1.msra.mxu0 0.0
        %1444 = vmatprep.subr.mxu0 0.0
        %1445 = vmatpush1.msra.mxu0 0.0
        %1446 = vmatprep.subr.mxu0 0.0
        %1447 = vmatpush1.msra.mxu0 0.0
        %1448 = vmatprep.subr.mxu0 0.0
        %1449 = vmatpush1.msra.mxu0 0.0
        %1450 = vmatprep.subr.mxu0 0.0
        %1451 = vmatpush1.msra.mxu0 0.0
        %1452 = vmatprep.subr.mxu0 0.0
        %1453 = vmatpush1.msra.mxu0 0.0
        %1454 = vmatprep.subr.mxu0 0.0
        %1455 = vmatpush1.msra.mxu0 0.0
        %1456 = vmatprep.subr.mxu0 0.0
        %1457 = vmatpush1.msra.mxu0 0.0
        %1458 = vmatprep.subr.mxu0 0.0
        %1459 = vmatpush1.msra.mxu0 0.0
        %1460 = vmatprep.subr.mxu0 0.0
        %1461 = vmatpush1.msra.mxu0 0.0
        %1462 = vmatprep.subr.mxu0 0.0
        %1463 = vmatpush1.msra.mxu0 0.0
        %1464 = vmatprep.subr.mxu0 0.0
        %1465 = vmatpush1.msra.mxu0 0.0
        %1466 = vmatprep.subr.mxu0 0.0
        %1467 = vmatpush1.msra.mxu0 0.0
        %1468 = vmatprep.subr.mxu0 0.0
        %1469 = vmatpush1.msra.mxu0 0.0
        %1470 = vmatprep.subr.mxu0 0.0
        %1471 = vmatpush1.msra.mxu0 0.0
        %1472 = vmatprep.subr.mxu0 0.0
        %1473 = vmatpush1.msra.mxu0 0.0
        %1474 = vmatprep.subr.mxu0 0.0
        %1475 = vmatpush1.msra.mxu0 0.0
        %1476 = vmatprep.subr.mxu0 0.0
        %1477 = vmatpush1.msra.mxu0 0.0
        %1478 = vmatprep.subr.mxu0 0.0
        %1479 = vmatpush1.msra.mxu0 0.0
        %1480 = vmatprep.subr.mxu0 0.0
        %1481 = vmatpush1.msra.mxu0 0.0
        %1482 = vmatprep.subr.mxu0 0.0
        %1483 = vmatpush1.msra.mxu0 0.0
        %1484 = vmatprep.subr.mxu0 0.0
        %1485 = vmatpush1.msra.mxu0 0.0
        %1486 = vmatprep.subr.mxu0 0.0
        %1487 = vmatpush1.msra.mxu0 0.0
        %1488 = vmatprep.subr.mxu0 0.0
        %1489 = vmatpush1.msra.mxu0 0.0
        %1490 = vmatprep.subr.mxu0 0.0
        %1491 = vmatpush1.msra.mxu0 0.0
        %1492 = vmatprep.mubr.f32.mxu0 0.0
        %1493 = vmatmul.mubr.f32.gmra.mrb[0].mxu0 %v1426
        %v1494 = vpop.f32.mrb[0].mxu0
        %v1495 = vadd.f32 0.0, %v1494
        %v1496 = vpop.f32.mrb[0].mxu0
        %1497 = vdwg.mxu0
        %1499 = vrot.lane.b32.xlu0 %v653, 112
        %v1500 = vpop.permute.xlu0 %1499
        %v1503 = vsel %vm1288, %v1346, 0
        %1505 = vmatprep.subr.mxu0 0.0
        %1506 = vmatpush1.msra.mxu0 %v1500
        %1507 = vmatprep.subr.mxu0 0.0
        %1508 = vmatpush1.msra.mxu0 0.0
        %1509 = vmatprep.subr.mxu0 0.0
        %1510 = vmatpush1.msra.mxu0 0.0
        %1511 = vmatprep.subr.mxu0 0.0
        %1512 = vmatpush1.msra.mxu0 0.0
        %1513 = vmatprep.subr.mxu0 0.0
        %1514 = vmatpush1.msra.mxu0 0.0
        %1515 = vmatprep.subr.mxu0 0.0
        %1516 = vmatpush1.msra.mxu0 0.0
        %1517 = vmatprep.subr.mxu0 0.0
        %1518 = vmatpush1.msra.mxu0 0.0
        %1519 = vmatprep.subr.mxu0 0.0
        %1520 = vmatpush1.msra.mxu0 0.0
        %1521 = vmatprep.subr.mxu0 0.0
        %1522 = vmatpush1.msra.mxu0 0.0
        %1523 = vmatprep.subr.mxu0 0.0
        %1524 = vmatpush1.msra.mxu0 0.0
        %1525 = vmatprep.subr.mxu0 0.0
        %1526 = vmatpush1.msra.mxu0 0.0
        %1527 = vmatprep.subr.mxu0 0.0
        %1528 = vmatpush1.msra.mxu0 0.0
        %1529 = vmatprep.subr.mxu0 0.0
        %1530 = vmatpush1.msra.mxu0 0.0
        %1531 = vmatprep.subr.mxu0 0.0
        %1532 = vmatpush1.msra.mxu0 0.0
        %1533 = vmatprep.subr.mxu0 0.0
        %1534 = vmatpush1.msra.mxu0 0.0
        %1535 = vmatprep.subr.mxu0 0.0
        %1536 = vmatpush1.msra.mxu0 0.0
        %1537 = vmatprep.subr.mxu0 0.0
        %1538 = vmatpush1.msra.mxu0 0.0
        %1539 = vmatprep.subr.mxu0 0.0
        %1540 = vmatpush1.msra.mxu0 0.0
        %1541 = vmatprep.subr.mxu0 0.0
        %1542 = vmatpush1.msra.mxu0 0.0
        %1543 = vmatprep.subr.mxu0 0.0
        %1544 = vmatpush1.msra.mxu0 0.0
        %1545 = vmatprep.subr.mxu0 0.0
        %1546 = vmatpush1.msra.mxu0 0.0
        %1547 = vmatprep.subr.mxu0 0.0
        %1548 = vmatpush1.msra.mxu0 0.0
        %1549 = vmatprep.subr.mxu0 0.0
        %1550 = vmatpush1.msra.mxu0 0.0
        %1551 = vmatprep.subr.mxu0 0.0
        %1552 = vmatpush1.msra.mxu0 0.0
        %1553 = vmatprep.subr.mxu0 0.0
        %1554 = vmatpush1.msra.mxu0 0.0
        %1555 = vmatprep.subr.mxu0 0.0
        %1556 = vmatpush1.msra.mxu0 0.0
        %1557 = vmatprep.subr.mxu0 0.0
        %1558 = vmatpush1.msra.mxu0 0.0
        %1559 = vmatprep.subr.mxu0 0.0
        %1560 = vmatpush1.msra.mxu0 0.0
        %1561 = vmatprep.subr.mxu0 0.0
        %1562 = vmatpush1.msra.mxu0 0.0
        %1563 = vmatprep.subr.mxu0 0.0
        %1564 = vmatpush1.msra.mxu0 0.0
        %1565 = vmatprep.subr.mxu0 0.0
        %1566 = vmatpush1.msra.mxu0 0.0
        %1567 = vmatprep.subr.mxu0 0.0
        %1568 = vmatpush1.msra.mxu0 0.0
        %1569 = vmatprep.mubr.f32.mxu0 0.0
        %1570 = vmatmul.mubr.f32.gmra.mrb[0].mxu0 %v1503
        %v1571 = vpop.f32.mrb[0].mxu0
        %v1572 = vadd.f32 0.0, %v1571
        %v1573 = vpop.f32.mrb[0].mxu0
        %1574 = vdwg.mxu0
        %1576 = vrot.lane.b32.xlu0 %v659, 112
        %v1577 = vpop.permute.xlu0 %1576
        %v1580 = vsel %vm1288, %v1347, 0
        %1582 = vmatprep.subr.mxu0 0.0
        %1583 = vmatpush1.msra.mxu0 %v1577
        %1584 = vmatprep.subr.mxu0 0.0
        %1585 = vmatpush1.msra.mxu0 0.0
        %1586 = vmatprep.subr.mxu0 0.0
        %1587 = vmatpush1.msra.mxu0 0.0
        %1588 = vmatprep.subr.mxu0 0.0
        %1589 = vmatpush1.msra.mxu0 0.0
        %1590 = vmatprep.subr.mxu0 0.0
        %1591 = vmatpush1.msra.mxu0 0.0
        %1592 = vmatprep.subr.mxu0 0.0
        %1593 = vmatpush1.msra.mxu0 0.0
        %1594 = vmatprep.subr.mxu0 0.0
        %1595 = vmatpush1.msra.mxu0 0.0
        %1596 = vmatprep.subr.mxu0 0.0
        %1597 = vmatpush1.msra.mxu0 0.0
        %1598 = vmatprep.subr.mxu0 0.0
        %1599 = vmatpush1.msra.mxu0 0.0
        %1600 = vmatprep.subr.mxu0 0.0
        %1601 = vmatpush1.msra.mxu0 0.0
        %1602 = vmatprep.subr.mxu0 0.0
        %1603 = vmatpush1.msra.mxu0 0.0
        %1604 = vmatprep.subr.mxu0 0.0
        %1605 = vmatpush1.msra.mxu0 0.0
        %1606 = vmatprep.subr.mxu0 0.0
        %1607 = vmatpush1.msra.mxu0 0.0
        %1608 = vmatprep.subr.mxu0 0.0
        %1609 = vmatpush1.msra.mxu0 0.0
        %1610 = vmatprep.subr.mxu0 0.0
        %1611 = vmatpush1.msra.mxu0 0.0
        %1612 = vmatprep.subr.mxu0 0.0
        %1613 = vmatpush1.msra.mxu0 0.0
        %1614 = vmatprep.subr.mxu0 0.0
        %1615 = vmatpush1.msra.mxu0 0.0
        %1616 = vmatprep.subr.mxu0 0.0
        %1617 = vmatpush1.msra.mxu0 0.0
        %1618 = vmatprep.subr.mxu0 0.0
        %1619 = vmatpush1.msra.mxu0 0.0
        %1620 = vmatprep.subr.mxu0 0.0
        %1621 = vmatpush1.msra.mxu0 0.0
        %1622 = vmatprep.subr.mxu0 0.0
        %1623 = vmatpush1.msra.mxu0 0.0
        %1624 = vmatprep.subr.mxu0 0.0
        %1625 = vmatpush1.msra.mxu0 0.0
        %1626 = vmatprep.subr.mxu0 0.0
        %1627 = vmatpush1.msra.mxu0 0.0
        %1628 = vmatprep.subr.mxu0 0.0
        %1629 = vmatpush1.msra.mxu0 0.0
        %1630 = vmatprep.subr.mxu0 0.0
        %1631 = vmatpush1.msra.mxu0 0.0
        %1632 = vmatprep.subr.mxu0 0.0
        %1633 = vmatpush1.msra.mxu0 0.0
        %1634 = vmatprep.subr.mxu0 0.0
        %1635 = vmatpush1.msra.mxu0 0.0
        %1636 = vmatprep.subr.mxu0 0.0
        %1637 = vmatpush1.msra.mxu0 0.0
        %1638 = vmatprep.subr.mxu0 0.0
        %1639 = vmatpush1.msra.mxu0 0.0
        %1640 = vmatprep.subr.mxu0 0.0
        %1641 = vmatpush1.msra.mxu0 0.0
        %1642 = vmatprep.subr.mxu0 0.0
        %1643 = vmatpush1.msra.mxu0 0.0
        %1644 = vmatprep.subr.mxu0 0.0
        %1645 = vmatpush1.msra.mxu0 0.0
        %1646 = vmatprep.mubr.f32.mxu0 0.0
        %1647 = vmatmul.mubr.f32.gmra.mrb[0].mxu0 %v1580
        %v1648 = vpop.f32.mrb[0].mxu0
        %v1649 = vadd.f32 0.0, %v1648
        %v1650 = vpop.f32.mrb[0].mxu0
        %1651 = vdwg.mxu0
        %1652 = vrot.lane.b32.xlu0 %v653, 96
        %v1653 = vpop.permute.xlu0 %1652
        %v1656 = vsel %vm1288, %v1348, 0
        %1658 = vmatprep.subr.mxu0 0.0
        %1659 = vmatpush1.msra.mxu0 %v1653
        %1660 = vmatprep.subr.mxu0 0.0
        %1661 = vmatpush1.msra.mxu0 0.0
        %1662 = vmatprep.subr.mxu0 0.0
        %1663 = vmatpush1.msra.mxu0 0.0
        %1664 = vmatprep.subr.mxu0 0.0
        %1665 = vmatpush1.msra.mxu0 0.0
        %1666 = vmatprep.subr.mxu0 0.0
        %1667 = vmatpush1.msra.mxu0 0.0
        %1668 = vmatprep.subr.mxu0 0.0
        %1669 = vmatpush1.msra.mxu0 0.0
        %1670 = vmatprep.subr.mxu0 0.0
        %1671 = vmatpush1.msra.mxu0 0.0
        %1672 = vmatprep.subr.mxu0 0.0
        %1673 = vmatpush1.msra.mxu0 0.0
        %1674 = vmatprep.subr.mxu0 0.0
        %1675 = vmatpush1.msra.mxu0 0.0
        %1676 = vmatprep.subr.mxu0 0.0
        %1677 = vmatpush1.msra.mxu0 0.0
        %1678 = vmatprep.subr.mxu0 0.0
        %1679 = vmatpush1.msra.mxu0 0.0
        %1680 = vmatprep.subr.mxu0 0.0
        %1681 = vmatpush1.msra.mxu0 0.0
        %1682 = vmatprep.subr.mxu0 0.0
        %1683 = vmatpush1.msra.mxu0 0.0
        %1684 = vmatprep.subr.mxu0 0.0
        %1685 = vmatpush1.msra.mxu0 0.0
        %1686 = vmatprep.subr.mxu0 0.0
        %1687 = vmatpush1.msra.mxu0 0.0
        %1688 = vmatprep.subr.mxu0 0.0
        %1689 = vmatpush1.msra.mxu0 0.0
        %1690 = vmatprep.subr.mxu0 0.0
        %1691 = vmatpush1.msra.mxu0 0.0
        %1692 = vmatprep.subr.mxu0 0.0
        %1693 = vmatpush1.msra.mxu0 0.0
        %1694 = vmatprep.subr.mxu0 0.0
        %1695 = vmatpush1.msra.mxu0 0.0
        %1696 = vmatprep.subr.mxu0 0.0
        %1697 = vmatpush1.msra.mxu0 0.0
        %1698 = vmatprep.subr.mxu0 0.0
        %1699 = vmatpush1.msra.mxu0 0.0
        %1700 = vmatprep.subr.mxu0 0.0
        %1701 = vmatpush1.msra.mxu0 0.0
        %1702 = vmatprep.subr.mxu0 0.0
        %1703 = vmatpush1.msra.mxu0 0.0
        %1704 = vmatprep.subr.mxu0 0.0
        %1705 = vmatpush1.msra.mxu0 0.0
        %1706 = vmatprep.subr.mxu0 0.0
        %1707 = vmatpush1.msra.mxu0 0.0
        %1708 = vmatprep.subr.mxu0 0.0
        %1709 = vmatpush1.msra.mxu0 0.0
        %1710 = vmatprep.subr.mxu0 0.0
        %1711 = vmatpush1.msra.mxu0 0.0
        %1712 = vmatprep.subr.mxu0 0.0
        %1713 = vmatpush1.msra.mxu0 0.0
        %1714 = vmatprep.subr.mxu0 0.0
        %1715 = vmatpush1.msra.mxu0 0.0
        %1716 = vmatprep.subr.mxu0 0.0
        %1717 = vmatpush1.msra.mxu0 0.0
        %1718 = vmatprep.subr.mxu0 0.0
        %1719 = vmatpush1.msra.mxu0 0.0
        %1720 = vmatprep.subr.mxu0 0.0
        %1721 = vmatpush1.msra.mxu0 0.0
        %1722 = vmatprep.mubr.f32.mxu0 0.0
        %1723 = vmatmul.mubr.f32.gmra.mrb[0].mxu0 %v1656
        %v1724 = vpop.f32.mrb[0].mxu0
        %v1725 = vadd.f32 0.0, %v1724
        %v1726 = vpop.f32.mrb[0].mxu0
        %1727 = vdwg.mxu0
        %1728 = vrot.lane.b32.xlu0 %v659, 96
        %v1729 = vpop.permute.xlu0 %1728
        %v1732 = vsel %vm1288, %v1349, 0
        %1734 = vmatprep.subr.mxu0 0.0
        %1735 = vmatpush1.msra.mxu0 %v1729
        %1736 = vmatprep.subr.mxu0 0.0
        %1737 = vmatpush1.msra.mxu0 0.0
        %1738 = vmatprep.subr.mxu0 0.0
        %1739 = vmatpush1.msra.mxu0 0.0
        %1740 = vmatprep.subr.mxu0 0.0
        %1741 = vmatpush1.msra.mxu0 0.0
        %1742 = vmatprep.subr.mxu0 0.0
        %1743 = vmatpush1.msra.mxu0 0.0
        %1744 = vmatprep.subr.mxu0 0.0
        %1745 = vmatpush1.msra.mxu0 0.0
        %1746 = vmatprep.subr.mxu0 0.0
        %1747 = vmatpush1.msra.mxu0 0.0
        %1748 = vmatprep.subr.mxu0 0.0
        %1749 = vmatpush1.msra.mxu0 0.0
        %1750 = vmatprep.subr.mxu0 0.0
        %1751 = vmatpush1.msra.mxu0 0.0
        %1752 = vmatprep.subr.mxu0 0.0
        %1753 = vmatpush1.msra.mxu0 0.0
        %1754 = vmatprep.subr.mxu0 0.0
        %1755 = vmatpush1.msra.mxu0 0.0
        %1756 = vmatprep.subr.mxu0 0.0
        %1757 = vmatpush1.msra.mxu0 0.0
        %1758 = vmatprep.subr.mxu0 0.0
        %1759 = vmatpush1.msra.mxu0 0.0
        %1760 = vmatprep.subr.mxu0 0.0
        %1761 = vmatpush1.msra.mxu0 0.0
        %1762 = vmatprep.subr.mxu0 0.0
        %1763 = vmatpush1.msra.mxu0 0.0
        %1764 = vmatprep.subr.mxu0 0.0
        %1765 = vmatpush1.msra.mxu0 0.0
        %1766 = vmatprep.subr.mxu0 0.0
        %1767 = vmatpush1.msra.mxu0 0.0
        %1768 = vmatprep.subr.mxu0 0.0
        %1769 = vmatpush1.msra.mxu0 0.0
        %1770 = vmatprep.subr.mxu0 0.0
        %1771 = vmatpush1.msra.mxu0 0.0
        %1772 = vmatprep.subr.mxu0 0.0
        %1773 = vmatpush1.msra.mxu0 0.0
        %1774 = vmatprep.subr.mxu0 0.0
        %1775 = vmatpush1.msra.mxu0 0.0
        %1776 = vmatprep.subr.mxu0 0.0
        %1777 = vmatpush1.msra.mxu0 0.0
        %1778 = vmatprep.subr.mxu0 0.0
        %1779 = vmatpush1.msra.mxu0 0.0
        %1780 = vmatprep.subr.mxu0 0.0
        %1781 = vmatpush1.msra.mxu0 0.0
        %1782 = vmatprep.subr.mxu0 0.0
        %1783 = vmatpush1.msra.mxu0 0.0
        %1784 = vmatprep.subr.mxu0 0.0
        %1785 = vmatpush1.msra.mxu0 0.0
        %1786 = vmatprep.subr.mxu0 0.0
        %1787 = vmatpush1.msra.mxu0 0.0
        %1788 = vmatprep.subr.mxu0 0.0
        %1789 = vmatpush1.msra.mxu0 0.0
        %1790 = vmatprep.subr.mxu0 0.0
        %1791 = vmatpush1.msra.mxu0 0.0
        %1792 = vmatprep.subr.mxu0 0.0
        %1793 = vmatpush1.msra.mxu0 0.0
        %1794 = vmatprep.subr.mxu0 0.0
        %1795 = vmatpush1.msra.mxu0 0.0
        %1796 = vmatprep.subr.mxu0 0.0
        %1797 = vmatpush1.msra.mxu0 0.0
        %1798 = vmatprep.mubr.f32.mxu0 0.0
        %1799 = vmatmul.mubr.f32.gmra.mrb[0].mxu0 %v1732
        %v1800 = vpop.f32.mrb[0].mxu0
        %v1801 = vadd.f32 0.0, %v1800
        %v1802 = vpop.f32.mrb[0].mxu0
        %1803 = vdwg.mxu0
        %1804 = vrot.lane.b32.xlu0 %v653, 80
        %v1805 = vpop.permute.xlu0 %1804
        %v1808 = vsel %vm1288, %v1350, 0
        %1810 = vmatprep.subr.mxu0 0.0
        %1811 = vmatpush1.msra.mxu0 %v1805
        %1812 = vmatprep.subr.mxu0 0.0
        %1813 = vmatpush1.msra.mxu0 0.0
        %1814 = vmatprep.subr.mxu0 0.0
        %1815 = vmatpush1.msra.mxu0 0.0
        %1816 = vmatprep.subr.mxu0 0.0
        %1817 = vmatpush1.msra.mxu0 0.0
        %1818 = vmatprep.subr.mxu0 0.0
        %1819 = vmatpush1.msra.mxu0 0.0
        %1820 = vmatprep.subr.mxu0 0.0
        %1821 = vmatpush1.msra.mxu0 0.0
        %1822 = vmatprep.subr.mxu0 0.0
        %1823 = vmatpush1.msra.mxu0 0.0
        %1824 = vmatprep.subr.mxu0 0.0
        %1825 = vmatpush1.msra.mxu0 0.0
        %1826 = vmatprep.subr.mxu0 0.0
        %1827 = vmatpush1.msra.mxu0 0.0
        %1828 = vmatprep.subr.mxu0 0.0
        %1829 = vmatpush1.msra.mxu0 0.0
        %1830 = vmatprep.subr.mxu0 0.0
        %1831 = vmatpush1.msra.mxu0 0.0
        %1832 = vmatprep.subr.mxu0 0.0
        %1833 = vmatpush1.msra.mxu0 0.0
        %1834 = vmatprep.subr.mxu0 0.0
        %1835 = vmatpush1.msra.mxu0 0.0
        %1836 = vmatprep.subr.mxu0 0.0
        %1837 = vmatpush1.msra.mxu0 0.0
        %1838 = vmatprep.subr.mxu0 0.0
        %1839 = vmatpush1.msra.mxu0 0.0
        %1840 = vmatprep.subr.mxu0 0.0
        %1841 = vmatpush1.msra.mxu0 0.0
        %1842 = vmatprep.subr.mxu0 0.0
        %1843 = vmatpush1.msra.mxu0 0.0
        %1844 = vmatprep.subr.mxu0 0.0
        %1845 = vmatpush1.msra.mxu0 0.0
        %1846 = vmatprep.subr.mxu0 0.0
        %1847 = vmatpush1.msra.mxu0 0.0
        %1848 = vmatprep.subr.mxu0 0.0
        %1849 = vmatpush1.msra.mxu0 0.0
        %1850 = vmatprep.subr.mxu0 0.0
        %1851 = vmatpush1.msra.mxu0 0.0
        %1852 = vmatprep.subr.mxu0 0.0
        %1853 = vmatpush1.msra.mxu0 0.0
        %1854 = vmatprep.subr.mxu0 0.0
        %1855 = vmatpush1.msra.mxu0 0.0
        %1856 = vmatprep.subr.mxu0 0.0
        %1857 = vmatpush1.msra.mxu0 0.0
        %1858 = vmatprep.subr.mxu0 0.0
        %1859 = vmatpush1.msra.mxu0 0.0
        %1860 = vmatprep.subr.mxu0 0.0
        %1861 = vmatpush1.msra.mxu0 0.0
        %1862 = vmatprep.subr.mxu0 0.0
        %1863 = vmatpush1.msra.mxu0 0.0
        %1864 = vmatprep.subr.mxu0 0.0
        %1865 = vmatpush1.msra.mxu0 0.0
        %1866 = vmatprep.subr.mxu0 0.0
        %1867 = vmatpush1.msra.mxu0 0.0
        %1868 = vmatprep.subr.mxu0 0.0
        %1869 = vmatpush1.msra.mxu0 0.0
        %1870 = vmatprep.subr.mxu0 0.0
        %1871 = vmatpush1.msra.mxu0 0.0
        %1872 = vmatprep.subr.mxu0 0.0
        %1873 = vmatpush1.msra.mxu0 0.0
        %1874 = vmatprep.mubr.f32.mxu0 0.0
        %1875 = vmatmul.mubr.f32.gmra.mrb[0].mxu0 %v1808
        %v1876 = vpop.f32.mrb[0].mxu0
        %v1877 = vadd.f32 0.0, %v1876
        %v1878 = vpop.f32.mrb[0].mxu0
        %1879 = vdwg.mxu0
        %1880 = vrot.lane.b32.xlu0 %v659, 80
        %v1881 = vpop.permute.xlu0 %1880
        %v1884 = vsel %vm1288, %v1351, 0
        %1886 = vmatprep.subr.mxu0 0.0
        %1887 = vmatpush1.msra.mxu0 %v1881
        %1888 = vmatprep.subr.mxu0 0.0
        %1889 = vmatpush1.msra.mxu0 0.0
        %1890 = vmatprep.subr.mxu0 0.0
        %1891 = vmatpush1.msra.mxu0 0.0
        %1892 = vmatprep.subr.mxu0 0.0
        %1893 = vmatpush1.msra.mxu0 0.0
        %1894 = vmatprep.subr.mxu0 0.0
        %1895 = vmatpush1.msra.mxu0 0.0
        %1896 = vmatprep.subr.mxu0 0.0
        %1897 = vmatpush1.msra.mxu0 0.0
        %1898 = vmatprep.subr.mxu0 0.0
        %1899 = vmatpush1.msra.mxu0 0.0
        %1900 = vmatprep.subr.mxu0 0.0
        %1901 = vmatpush1.msra.mxu0 0.0
        %1902 = vmatprep.subr.mxu0 0.0
        %1903 = vmatpush1.msra.mxu0 0.0
        %1904 = vmatprep.subr.mxu0 0.0
        %1905 = vmatpush1.msra.mxu0 0.0
        %1906 = vmatprep.subr.mxu0 0.0
        %1907 = vmatpush1.msra.mxu0 0.0
        %1908 = vmatprep.subr.mxu0 0.0
        %1909 = vmatpush1.msra.mxu0 0.0
        %1910 = vmatprep.subr.mxu0 0.0
        %1911 = vmatpush1.msra.mxu0 0.0
        %1912 = vmatprep.subr.mxu0 0.0
        %1913 = vmatpush1.msra.mxu0 0.0
        %1914 = vmatprep.subr.mxu0 0.0
        %1915 = vmatpush1.msra.mxu0 0.0
        %1916 = vmatprep.subr.mxu0 0.0
        %1917 = vmatpush1.msra.mxu0 0.0
        %1918 = vmatprep.subr.mxu0 0.0
        %1919 = vmatpush1.msra.mxu0 0.0
        %1920 = vmatprep.subr.mxu0 0.0
        %1921 = vmatpush1.msra.mxu0 0.0
        %1922 = vmatprep.subr.mxu0 0.0
        %1923 = vmatpush1.msra.mxu0 0.0
        %1924 = vmatprep.subr.mxu0 0.0
        %1925 = vmatpush1.msra.mxu0 0.0
        %1926 = vmatprep.subr.mxu0 0.0
        %1927 = vmatpush1.msra.mxu0 0.0
        %1928 = vmatprep.subr.mxu0 0.0
        %1929 = vmatpush1.msra.mxu0 0.0
        %1930 = vmatprep.subr.mxu0 0.0
        %1931 = vmatpush1.msra.mxu0 0.0
        %1932 = vmatprep.subr.mxu0 0.0
        %1933 = vmatpush1.msra.mxu0 0.0
        %1934 = vmatprep.subr.mxu0 0.0
        %1935 = vmatpush1.msra.mxu0 0.0
        %1936 = vmatprep.subr.mxu0 0.0
        %1937 = vmatpush1.msra.mxu0 0.0
        %1938 = vmatprep.subr.mxu0 0.0
        %1939 = vmatpush1.msra.mxu0 0.0
        %1940 = vmatprep.subr.mxu0 0.0
        %1941 = vmatpush1.msra.mxu0 0.0
        %1942 = vmatprep.subr.mxu0 0.0
        %1943 = vmatpush1.msra.mxu0 0.0
        %1944 = vmatprep.subr.mxu0 0.0
        %1945 = vmatpush1.msra.mxu0 0.0
        %1946 = vmatprep.subr.mxu0 0.0
        %1947 = vmatpush1.msra.mxu0 0.0
        %1948 = vmatprep.subr.mxu0 0.0
        %1949 = vmatpush1.msra.mxu0 0.0
        %1950 = vmatprep.mubr.f32.mxu0 0.0
        %1951 = vmatmul.mubr.f32.gmra.mrb[0].mxu0 %v1884
        %v1952 = vpop.f32.mrb[0].mxu0
        %v1953 = vadd.f32 0.0, %v1952
        %v1954 = vpop.f32.mrb[0].mxu0
        %1955 = vdwg.mxu0
        %1958 = vrot.lane.b32.xlu0 %v1572, 16
        %v1959 = vpop.permute.xlu0 %1958
        %1960 = vrot.lane.b32.xlu0 %v1649, 16
        %v1961 = vpop.permute.xlu0 %1960
        %1966 = vrot.lane.b32.xlu0 %v1725, 32
        %v1967 = vpop.permute.xlu0 %1966
        %1968 = vrot.lane.b32.xlu0 %v1801, 32
        %v1969 = vpop.permute.xlu0 %1968
        %1974 = vrot.lane.b32.xlu0 %v1877, 48
        %v1975 = vpop.permute.xlu0 %1974
        %1976 = vrot.lane.b32.xlu0 %v1953, 48
        %v1977 = vpop.permute.xlu0 %1976
        %v1980 = vsel %vm666, %v1422, %v1959
        %v1981 = vsel %vm666, %v1495, %v1961
        %v1982 = vsel %vm577, %v1980, %v1967
        %v1983 = vsel %vm577, %v1981, %v1969
        %vm1984 = vcmask 392192
        %v1985 = vsel %vm1984, %v1982, %v1975
        %v1986 = vsel %vm1984, %v1983, %v1977
        %v1987 = vld [vmem:[%s526] sm:$0xff]
        %v1988 = vld [vmem:[%s526 + $0x8] sm:$0xff]
        %v1989 = vld [vmem:[%s526 + $0x10] sm:$0xff]
        %v1990 = vld [vmem:[%s526 + $0x18] sm:$0xff]
        %v1991 = vld [vmem:[%s526 + $0x20] sm:$0xff]
        %v1992 = vld [vmem:[%s526 + $0x28] sm:$0xff]
        %v1993 = vld [vmem:[%s526 + $0x30] sm:$0xff]
        %v1994 = vld [vmem:[%s526 + $0x38] sm:$0xff]
        %v1995 = vld [vmem:[%s529] sm:$0x1]
        %v1997 = vlaneseq
        %v1998 = vshrl.u32 %v1997, 7
        %v1999 = vsub.s32 0, %v1998
        %v2000 = vrot.slane %v1995, %v1999
        %vm2002 = vcmask 523264
        %v2004 = vsel %vm2002, %v1985, 0
        %v2007 = vsel %vm2002, %v1986, 0
        %2009 = vmatprep.subr.mxu0 0.0
        %2010 = vmatpush1.msra.mxu0 %v1987
        %2011 = vmatprep.subr.mxu0 0.0
        %2012 = vmatpush1.msra.mxu0 %v1988
        %2013 = vmatprep.subr.mxu0 0.0
        %2014 = vmatpush1.msra.mxu0 %v1989
        %2015 = vmatprep.subr.mxu0 0.0
        %2016 = vmatpush1.msra.mxu0 %v1990
        %2017 = vmatprep.subr.mxu0 0.0
        %2018 = vmatpush1.msra.mxu0 %v1991
        %2019 = vmatprep.subr.mxu0 0.0
        %2020 = vmatpush1.msra.mxu0 %v1992
        %2021 = vmatprep.subr.mxu0 0.0
        %2022 = vmatpush1.msra.mxu0 %v1993
        %2023 = vmatprep.subr.mxu0 0.0
        %2024 = vmatpush1.msra.mxu0 %v1994
        %2025 = vmatprep.subr.mxu0 0.0
        %2026 = vmatpush1.msra.mxu0 0.0
        %2027 = vmatprep.subr.mxu0 0.0
        %2028 = vmatpush1.msra.mxu0 0.0
        %2029 = vmatprep.subr.mxu0 0.0
        %2030 = vmatpush1.msra.mxu0 0.0
        %2031 = vmatprep.subr.mxu0 0.0
        %2032 = vmatpush1.msra.mxu0 0.0
        %2033 = vmatprep.subr.mxu0 0.0
        %2034 = vmatpush1.msra.mxu0 0.0
        %2035 = vmatprep.subr.mxu0 0.0
        %2036 = vmatpush1.msra.mxu0 0.0
        %2037 = vmatprep.subr.mxu0 0.0
        %2038 = vmatpush1.msra.mxu0 0.0
        %2039 = vmatprep.subr.mxu0 0.0
        %2040 = vmatpush1.msra.mxu0 0.0
        %2041 = vmatprep.subr.mxu0 0.0
        %2042 = vmatpush1.msra.mxu0 0.0
        %2043 = vmatprep.subr.mxu0 0.0
        %2044 = vmatpush1.msra.mxu0 0.0
        %2045 = vmatprep.subr.mxu0 0.0
        %2046 = vmatpush1.msra.mxu0 0.0
        %2047 = vmatprep.subr.mxu0 0.0
        %2048 = vmatpush1.msra.mxu0 0.0
        %2049 = vmatprep.subr.mxu0 0.0
        %2050 = vmatpush1.msra.mxu0 0.0
        %2051 = vmatprep.subr.mxu0 0.0
        %2052 = vmatpush1.msra.mxu0 0.0
        %2053 = vmatprep.subr.mxu0 0.0
        %2054 = vmatpush1.msra.mxu0 0.0
        %2055 = vmatprep.subr.mxu0 0.0
        %2056 = vmatpush1.msra.mxu0 0.0
        %2057 = vmatprep.subr.mxu0 0.0
        %2058 = vmatpush1.msra.mxu0 0.0
        %2059 = vmatprep.subr.mxu0 0.0
        %2060 = vmatpush1.msra.mxu0 0.0
        %2061 = vmatprep.subr.mxu0 0.0
        %2062 = vmatpush1.msra.mxu0 0.0
        %2063 = vmatprep.subr.mxu0 0.0
        %2064 = vmatpush1.msra.mxu0 0.0
        %2065 = vmatprep.subr.mxu0 0.0
        %2066 = vmatpush1.msra.mxu0 0.0
        %2067 = vmatprep.subr.mxu0 0.0
        %2068 = vmatpush1.msra.mxu0 0.0
        %2069 = vmatprep.subr.mxu0 0.0
        %2070 = vmatpush1.msra.mxu0 0.0
        %2071 = vmatprep.subr.mxu0 0.0
        %2072 = vmatpush1.msra.mxu0 0.0
        %2073 = vmatprep.mubr.f32.mxu0 0.0
        %2074 = vmatmul.mubr.f32.gmra.mrb[0].mxu0 %v2004
        %v2075 = vpop.f32.mrb[0].mxu0
        %v2076 = vadd.f32 %v2000, %v2075
        %v2077 = vpop.f32.mrb[0].mxu0
        %2078 = vmatprep.mubr.f32.mxu0 0.0
        %2079 = vmatmul.mubr.f32.gmra.mrb[0].mxu0 %v2007
        %v2080 = vpop.f32.mrb[0].mxu0
        %v2081 = vadd.f32 %v2000, %v2080
        %v2082 = vpop.f32.mrb[0].mxu0
        %2083 = vdwg.mxu0
        %v2084 = vadd.f32 %v2076, %v567
        %v2085 = vadd.f32 %v2081, %v568
        %v2086 = vld [vmem:[%s532] sm:$0x1]
        %v2087 = vld [vmem:[%s535] sm:$0x1]
        %v2088 = vsel %vm577, %v2084, 0.0
        %2089 = vadd.xlane.f32.xlu0 %v2088
        %v2090 = vpop.xlane.xlu0 %2089
        %v2091 = vsel %vm577, %v2085, 0.0
        %2092 = vadd.xlane.f32.xlu0 %v2091
        %v2093 = vpop.xlane.xlu0 %2092
        %v2094 = vrcp.pop 32.0
        %v2095 = vmul.f32 %v2090, %v2094
        %v2096 = vmul.f32 %v2093, %v2094
        %v2097 = vsub.f32 %v2084, %v2095
        %v2098 = vsub.f32 %v2085, %v2096
        %v2099 = vmul.f32 %v2097, %v2097
        %v2100 = vmul.f32 %v2098, %v2098
        %v2101 = vsel %vm577, %v2099, 0.0
        %2102 = vadd.xlane.f32.xlu0 %v2101
        %v2103 = vpop.xlane.xlu0 %2102
        %v2104 = vsel %vm577, %v2100, 0.0
        %2105 = vadd.xlane.f32.xlu0 %v2104
        %v2106 = vpop.xlane.xlu0 %2105
        %v2107 = vmul.f32 %v2103, %v2094
        %v2108 = vmul.f32 %v2106, %v2094
        %v2109 = vadd.f32 %v2107, 1e-05
        %v2110 = vadd.f32 %v2108, 1e-05
        %v2111 = vrsqrt.pop %v2109
        %v2112 = vrsqrt.pop %v2110
        %v2113 = vmul.f32 %v2097, %v2111
        %v2114 = vmul.f32 %v2098, %v2112
        %v2116 = vlaneseq
        %v2117 = vshrl.u32 %v2116, 7
        %v2118 = vsub.s32 0, %v2117
        %v2119 = vrot.slane %v2086, %v2118
        %v2121 = vmul.f32 %v2113, %v2119
        %v2122 = vmul.f32 %v2114, %v2119
        %v2124 = vlaneseq
        %v2125 = vshrl.u32 %v2124, 7
        %v2126 = vsub.s32 0, %v2125
        %v2127 = vrot.slane %v2087, %v2126
        %v2129 = vadd.f32 %v2121, %v2127
        %v2130 = vadd.f32 %v2122, %v2127
        %v2131 = vld [vmem:[%s540] sm:$0xff]
        %v2132 = vld [vmem:[%s540 + $0x8] sm:$0xff]
        %v2133 = vld [vmem:[%s540 + $0x10] sm:$0xff]
        %v2134 = vld [vmem:[%s540 + $0x18] sm:$0xff]
        %v2135 = vld [vmem:[%s543] sm:$0x1]
        %v2137 = vlaneseq
        %v2138 = vshrl.u32 %v2137, 7
        %v2139 = vsub.s32 0, %v2138
        %v2140 = vrot.slane %v2135, %v2139
        %v2143 = vsel %vm577, %v2129, 0
        %v2146 = vsel %vm577, %v2130, 0
        %2148 = vmatprep.subr.mxu0 0.0
        %2149 = vmatpush1.msra.mxu0 %v2131
        %2150 = vmatprep.subr.mxu0 0.0
        %2151 = vmatpush1.msra.mxu0 %v2132
        %2152 = vmatprep.subr.mxu0 0.0
        %2153 = vmatpush1.msra.mxu0 %v2133
        %2154 = vmatprep.subr.mxu0 0.0
        %2155 = vmatpush1.msra.mxu0 %v2134
        %2156 = vmatprep.subr.mxu0 0.0
        %2157 = vmatpush1.msra.mxu0 0.0
        %2158 = vmatprep.subr.mxu0 0.0
        %2159 = vmatpush1.msra.mxu0 0.0
        %2160 = vmatprep.subr.mxu0 0.0
        %2161 = vmatpush1.msra.mxu0 0.0
        %2162 = vmatprep.subr.mxu0 0.0
        %2163 = vmatpush1.msra.mxu0 0.0
        %2164 = vmatprep.subr.mxu0 0.0
        %2165 = vmatpush1.msra.mxu0 0.0
        %2166 = vmatprep.subr.mxu0 0.0
        %2167 = vmatpush1.msra.mxu0 0.0
        %2168 = vmatprep.subr.mxu0 0.0
        %2169 = vmatpush1.msra.mxu0 0.0
        %2170 = vmatprep.subr.mxu0 0.0
        %2171 = vmatpush1.msra.mxu0 0.0
        %2172 = vmatprep.subr.mxu0 0.0
        %2173 = vmatpush1.msra.mxu0 0.0
        %2174 = vmatprep.subr.mxu0 0.0
        %2175 = vmatpush1.msra.mxu0 0.0
        %2176 = vmatprep.subr.mxu0 0.0
        %2177 = vmatpush1.msra.mxu0 0.0
        %2178 = vmatprep.subr.mxu0 0.0
        %2179 = vmatpush1.msra.mxu0 0.0
        %2180 = vmatprep.subr.mxu0 0.0
        %2181 = vmatpush1.msra.mxu0 0.0
        %2182 = vmatprep.subr.mxu0 0.0
        %2183 = vmatpush1.msra.mxu0 0.0
        %2184 = vmatprep.subr.mxu0 0.0
        %2185 = vmatpush1.msra.mxu0 0.0
        %2186 = vmatprep.subr.mxu0 0.0
        %2187 = vmatpush1.msra.mxu0 0.0
        %2188 = vmatprep.subr.mxu0 0.0
        %2189 = vmatpush1.msra.mxu0 0.0
        %2190 = vmatprep.subr.mxu0 0.0
        %2191 = vmatpush1.msra.mxu0 0.0
        %2192 = vmatprep.subr.mxu0 0.0
        %2193 = vmatpush1.msra.mxu0 0.0
        %2194 = vmatprep.subr.mxu0 0.0
        %2195 = vmatpush1.msra.mxu0 0.0
        %2196 = vmatprep.subr.mxu0 0.0
        %2197 = vmatpush1.msra.mxu0 0.0
        %2198 = vmatprep.subr.mxu0 0.0
        %2199 = vmatpush1.msra.mxu0 0.0
        %2200 = vmatprep.subr.mxu0 0.0
        %2201 = vmatpush1.msra.mxu0 0.0
        %2202 = vmatprep.subr.mxu0 0.0
        %2203 = vmatpush1.msra.mxu0 0.0
        %2204 = vmatprep.subr.mxu0 0.0
        %2205 = vmatpush1.msra.mxu0 0.0
        %2206 = vmatprep.subr.mxu0 0.0
        %2207 = vmatpush1.msra.mxu0 0.0
        %2208 = vmatprep.subr.mxu0 0.0
        %2209 = vmatpush1.msra.mxu0 0.0
        %2210 = vmatprep.subr.mxu0 0.0
        %2211 = vmatpush1.msra.mxu0 0.0
        %2212 = vmatprep.mubr.f32.mxu0 0.0
        %2213 = vmatmul.mubr.f32.gmra.mrb[0].mxu0 %v2143
        %v2214 = vpop.f32.mrb[0].mxu0
        %v2215 = vadd.f32 %v2140, %v2214
        %v2216 = vpop.f32.mrb[0].mxu0
        %2217 = vmatprep.mubr.f32.mxu0 0.0
        %2218 = vmatmul.mubr.f32.gmra.mrb[0].mxu0 %v2146
        %v2219 = vpop.f32.mrb[0].mxu0
        %v2220 = vadd.f32 %v2140, %v2219
        %v2221 = vpop.f32.mrb[0].mxu0
        %2222 = vdwg.mxu0
        %v2223 = vmax.f32 %v2215, 0.0
        %v2224 = vmax.f32 %v2220, 0.0
        %v2225 = vld [vmem:[%s548] sm:$0xff]
        %v2226 = vld [vmem:[%s548 + $0x8] sm:$0xff]
        %v2227 = vld [vmem:[%s548 + $0x10] sm:$0xff]
        %v2228 = vld [vmem:[%s548 + $0x18] sm:$0xff]
        %v2229 = vld [vmem:[%s548 + $0x20] sm:$0xff]
        %v2230 = vld [vmem:[%s548 + $0x28] sm:$0xff]
        %v2231 = vld [vmem:[%s548 + $0x30] sm:$0xff]
        %v2232 = vld [vmem:[%s548 + $0x38] sm:$0xff]
        %v2233 = vld [vmem:[%s551] sm:$0x1]
        %v2235 = vlaneseq
        %v2236 = vshrl.u32 %v2235, 7
        %v2237 = vsub.s32 0, %v2236
        %v2238 = vrot.slane %v2233, %v2237
        %v2241 = vsel %vm2002, %v2223, 0
        %v2244 = vsel %vm2002, %v2224, 0
        %2246 = vmatprep.subr.mxu0 0.0
        %2247 = vmatpush1.msra.mxu0 %v2225
        %2248 = vmatprep.subr.mxu0 0.0
        %2249 = vmatpush1.msra.mxu0 %v2226
        %2250 = vmatprep.subr.mxu0 0.0
        %2251 = vmatpush1.msra.mxu0 %v2227
        %2252 = vmatprep.subr.mxu0 0.0
        %2253 = vmatpush1.msra.mxu0 %v2228
        %2254 = vmatprep.subr.mxu0 0.0
        %2255 = vmatpush1.msra.mxu0 %v2229
        %2256 = vmatprep.subr.mxu0 0.0
        %2257 = vmatpush1.msra.mxu0 %v2230
        %2258 = vmatprep.subr.mxu0 0.0
        %2259 = vmatpush1.msra.mxu0 %v2231
        %2260 = vmatprep.subr.mxu0 0.0
        %2261 = vmatpush1.msra.mxu0 %v2232
        %2262 = vmatprep.subr.mxu0 0.0
        %2263 = vmatpush1.msra.mxu0 0.0
        %2264 = vmatprep.subr.mxu0 0.0
        %2265 = vmatpush1.msra.mxu0 0.0
        %2266 = vmatprep.subr.mxu0 0.0
        %2267 = vmatpush1.msra.mxu0 0.0
        %2268 = vmatprep.subr.mxu0 0.0
        %2269 = vmatpush1.msra.mxu0 0.0
        %2270 = vmatprep.subr.mxu0 0.0
        %2271 = vmatpush1.msra.mxu0 0.0
        %2272 = vmatprep.subr.mxu0 0.0
        %2273 = vmatpush1.msra.mxu0 0.0
        %2274 = vmatprep.subr.mxu0 0.0
        %2275 = vmatpush1.msra.mxu0 0.0
        %2276 = vmatprep.subr.mxu0 0.0
        %2277 = vmatpush1.msra.mxu0 0.0
        %2278 = vmatprep.subr.mxu0 0.0
        %2279 = vmatpush1.msra.mxu0 0.0
        %2280 = vmatprep.subr.mxu0 0.0
        %2281 = vmatpush1.msra.mxu0 0.0
        %2282 = vmatprep.subr.mxu0 0.0
        %2283 = vmatpush1.msra.mxu0 0.0
        %2284 = vmatprep.subr.mxu0 0.0
        %2285 = vmatpush1.msra.mxu0 0.0
        %2286 = vmatprep.subr.mxu0 0.0
        %2287 = vmatpush1.msra.mxu0 0.0
        %2288 = vmatprep.subr.mxu0 0.0
        %2289 = vmatpush1.msra.mxu0 0.0
        %2290 = vmatprep.subr.mxu0 0.0
        %2291 = vmatpush1.msra.mxu0 0.0
        %2292 = vmatprep.subr.mxu0 0.0
        %2293 = vmatpush1.msra.mxu0 0.0
        %2294 = vmatprep.subr.mxu0 0.0
        %2295 = vmatpush1.msra.mxu0 0.0
        %2296 = vmatprep.subr.mxu0 0.0
        %2297 = vmatpush1.msra.mxu0 0.0
        %2298 = vmatprep.subr.mxu0 0.0
        %2299 = vmatpush1.msra.mxu0 0.0
        %2300 = vmatprep.subr.mxu0 0.0
        %2301 = vmatpush1.msra.mxu0 0.0
        %2302 = vmatprep.subr.mxu0 0.0
        %2303 = vmatpush1.msra.mxu0 0.0
        %2304 = vmatprep.subr.mxu0 0.0
        %2305 = vmatpush1.msra.mxu0 0.0
        %2306 = vmatprep.subr.mxu0 0.0
        %2307 = vmatpush1.msra.mxu0 0.0
        %2308 = vmatprep.subr.mxu0 0.0
        %2309 = vmatpush1.msra.mxu0 0.0
        %2310 = vmatprep.mubr.f32.mxu0 0.0
        %2311 = vmatmul.mubr.f32.gmra.mrb[0].mxu0 %v2241
        %v2312 = vpop.f32.mrb[0].mxu0
        %v2313 = vadd.f32 %v2238, %v2312
        %v2314 = vpop.f32.mrb[0].mxu0
        %2315 = vmatprep.mubr.f32.mxu0 0.0
        %2316 = vmatmul.mubr.f32.gmra.mrb[0].mxu0 %v2244
        %v2317 = vpop.f32.mrb[0].mxu0
        %v2318 = vadd.f32 %v2238, %v2317
        %v2319 = vpop.f32.mrb[0].mxu0
        %2320 = vdwg.mxu0
        %v2321 = vadd.f32 %v2313, %v2129
        %v2322 = vadd.f32 %v2318, %v2130
        %v2323 = vld [vmem:[%s554] sm:$0x1]
        %v2324 = vld [vmem:[%s557] sm:$0x1]
        %v2325 = vsel %vm577, %v2321, 0.0
        %2326 = vadd.xlane.f32.xlu0 %v2325
        %v2327 = vpop.xlane.xlu0 %2326
        %v2328 = vsel %vm577, %v2322, 0.0
        %2329 = vadd.xlane.f32.xlu0 %v2328
        %v2330 = vpop.xlane.xlu0 %2329
        %v2331 = vmul.f32 %v2327, %v2094
        %v2332 = vmul.f32 %v2330, %v2094
        %v2333 = vsub.f32 %v2321, %v2331
        %v2334 = vsub.f32 %v2322, %v2332
        %v2335 = vmul.f32 %v2333, %v2333
        %v2336 = vmul.f32 %v2334, %v2334
        %v2337 = vsel %vm577, %v2335, 0.0
        %2338 = vadd.xlane.f32.xlu0 %v2337
        %v2339 = vpop.xlane.xlu0 %2338
        %v2340 = vsel %vm577, %v2336, 0.0
        %2341 = vadd.xlane.f32.xlu0 %v2340
        %v2342 = vpop.xlane.xlu0 %2341
        %v2343 = vmul.f32 %v2339, %v2094
        %v2344 = vmul.f32 %v2342, %v2094
        %v2345 = vadd.f32 %v2343, 1e-05
        %v2346 = vadd.f32 %v2344, 1e-05
        %v2347 = vrsqrt.pop %v2345
        %v2348 = vrsqrt.pop %v2346
        %v2349 = vmul.f32 %v2333, %v2347
        %v2350 = vmul.f32 %v2334, %v2348
        %v2352 = vlaneseq
        %v2353 = vshrl.u32 %v2352, 7
        %v2354 = vsub.s32 0, %v2353
        %v2355 = vrot.slane %v2323, %v2354
        %v2357 = vmul.f32 %v2349, %v2355
        %v2358 = vmul.f32 %v2350, %v2355
        %v2360 = vlaneseq
        %v2361 = vshrl.u32 %v2360, 7
        %v2362 = vsub.s32 0, %v2361
        %v2363 = vrot.slane %v2324, %v2362
        %v2365 = vadd.f32 %v2357, %v2363
        %v2366 = vadd.f32 %v2358, %v2363
        %2367 = vst.msk [vmem:[#allocation2] sm:$0xff] %vm577, %v2365
        %2368 = vst.msk [vmem:[#allocation2 + $0x8] sm:$0xff] %vm577, %v2366
        %p2369 = scmp.eq.s32.totalorder %s24, 1
        // Predicated region
        $region73: #{tpu_custom_call.1} parent=67 // pred_check
          %p2370 = pneg %p2369
        $region74: #{tpu_custom_call.1} parent=67 // pred_check_branch
          %2372 = sbr.rel (%p2370) target = $region76
        $region75: #{tpu_custom_call.1} parent=67 // pred_region
          %2373 = vst.msk [vmem:[#allocation3] sm:$0xff] %vm577, %v2365
          %2374 = vst.msk [vmem:[#allocation3 + $0x8] sm:$0xff] %vm577, %v2366
        $region76: #{tpu_custom_call.1} parent=67 // pred_fallthru
          _
        // Predicated region
        $region77: #{tpu_custom_call.1} parent=67 // pred_check
          %p2375 = pneg %p344
        $region78: #{tpu_custom_call.1} parent=67 // pred_check_branch
          %2377 = sbr.rel (%p2375) target = $region80
        $region79: #{tpu_custom_call.1} parent=67 // pred_region
          %s2379 = ssub.s32 256, 256
          %2380 = vsyncadd [#allocation4], %s2379
          %s2381 = sshll.u32 [#allocation3], 4
          %s2382 = int_to_ptr.vmem [resolvable:$true] %s2381
          %2387 = dma.vmem_to_hbm [thread:$0]  %s2382, 256, %s12, [#allocation4], 128, 128, 8
        $region80: #{tpu_custom_call.1} parent=67 // pred_fallthru
          _
        // Predicated region
        $region81: #{tpu_custom_call.1} parent=67 // pred_check
          %p2388 = pneg %p344
        $region82: #{tpu_custom_call.1} parent=67 // pred_check_branch
          %2390 = sbr.rel (%p2388) target = $region84
        $region83: #{tpu_custom_call.1} parent=67 // pred_region
          %2391 = dma.done [#allocation4], 256
        $region84: #{tpu_custom_call.1} parent=67 // pred_fallthru
          _
      $region68: #{tpu_custom_call.1} parent=5 // pred_fallthru
        _
      %p2392 = scmp.le.s32.totalorder 2, %s19
      // Predicated region
      $region85: #{tpu_custom_call.1} parent=5 // pred_check
        %p2393 = pneg %p2392
      $region86: #{tpu_custom_call.1} parent=5 // pred_check_branch
        %2395 = sbr.rel (%p2393) target = $region88
      $region87: #{tpu_custom_call.1} parent=5 // pred_region
        %s2396 = ssub.s32 %s19, 2
      $region88: #{tpu_custom_call.1} parent=5 // pred_fallthru
        _
    $region6: #{tpu_custom_call.1} parent=1 // loop_footer
      %s23 = sadd.s32 1, %s19
    $region7: #{tpu_custom_call.1} parent=1 // loop_footer_branch
      %18 = sbr.rel target = $region3
    $region8: #{tpu_custom_call.1} parent=1 // loop_exit
      _
    %2397 = vsyncpa [#allocation4], 1
    %s2398 = scalar_lea.sflag [#allocation4], 1
    %2399 = vsyncpa %s2398, 1

</llo_original>
